<compile_context>
chip_gen: v5e
topology: v5e:2x2
jax: 0.10.0
libtpu: 0.0.40
codegen_flags: <defaults>
</compile_context>

<pallas_src>
import functools
import math

import jax
import jax.numpy as jnp
import numpy as np
from jax.experimental import pallas as pl
from jax.experimental.pallas import tpu as pltpu


def _round_up(x, m):
    return (x + m - 1) // m * m


def _layout(H, W, P):
    """Flattened padded-spatial layout shared by every block of the D3Block.

    Wp  : padded row length (P halo columns each side)
    S   : flat spatial length = lead + (H + 2P + 2) rows of Wp
          (P halo rows + 1 zero guard row on each side, plus a lane-alignment lead)
    base: flat offset of the first interior row (128-aligned so layer writes are
          lane-tile aligned)
    """
    Wp = W + 2 * P
    inner = (H + 2 * P + 2) * Wp
    base0 = (1 + P) * Wp
    lead = _round_up(base0, 128) - base0
    return Wp, lead + inner, lead + base0, lead


# ----------------------------------------------------------------------------
# Fused D2-block kernel.  One grid step = one batch element.
# refs = [x, mask, (w_bneck, b_bneck)?, (w_l0, b_l0), ..., o, patch_scratch]
# ----------------------------------------------------------------------------
def _d2_block_kernel(*refs, has_bneck, cur0, k, layer_dils, Wp, HWp, base):
    x_ref = refs[0]        # (Cin, S)  block input (zero halos)
    mask_ref = refs[1]     # (1, HWp)  1.0 at interior columns, 0.0 at halo columns
    o_ref = refs[-2]       # (Cout, S) block output == working activation buffer
    patch_ref = refs[-1]   # (Kmax, HWp) im2col staging scratch
    w_refs = refs[2:-2]

    # Zero the output block once: establishes the zero halos of every channel.
    o_ref[...] = jnp.zeros_like(o_ref)
    # Zero the patch scratch once so padded K rows contribute exactly 0.
    patch_ref[...] = jnp.zeros_like(patch_ref)

    mask = mask_ref[...]                                # hoisted, reused by all layers

    idx = 0
    if has_bneck:
        wb = w_refs[0][...]                             # (cur0, Cin)
        bb = w_refs[1][...]                             # (cur0, 1)
        idx = 2
        y = jnp.dot(wb, x_ref[:, base:base + HWp],
                    preferred_element_type=jnp.float32)
        o_ref[0:cur0, base:base + HWp] = (y + bb) * mask
    else:
        o_ref[0:cur0, :] = x_ref[...]                   # keep input channels (concat)

    cur = cur0
    for dils in layer_dils:
        w = w_refs[idx][...]                            # (k, n_taps * cur_p)
        b = w_refs[idx + 1][...]                        # (k, 1) summed biases
        idx += 2
        cur_p = _round_up(cur, 8)                       # 8-aligned channel stride in patch
        t = 0
        for d in dils:                                  # static: unrolled at trace time
            for ky in range(3):
                for kx in range(3):
                    shift = (ky - 1) * d * Wp + (kx - 1) * d
                    patch_ref[t * cur_p:t * cur_p + cur, :] = (
                        o_ref[0:cur, base + shift:base + shift + HWp])
                    t += 1
        # Single fused matmul over all taps/dilations of this layer.
        y = jnp.dot(w, patch_ref[0:t * cur_p, :],
                    preferred_element_type=jnp.float32)     # (k, HWp)
        o_ref[cur:cur + k, base:base + HWp] = (y + b) * mask
        cur += k


def _d2_block_pallas(x_int, block, *, H, W, P, k):
    N, Cin, S = x_int.shape
    Wp, S_exp, base, _lead = _layout(H, W, P)
    assert S == S_exp, (S, S_exp)
    HWp = H * Wp

    cols = np.arange(HWp) % Wp
    mask = jnp.asarray(((cols >= P) & (cols < P + W)).astype(np.float32)[None, :])

    args = [mask]
    in_specs = [
        pl.BlockSpec((None, Cin, S), lambda n: (n, 0, 0)),
        pl.BlockSpec((1, HWp), lambda n: (0, 0)),
    ]

    has_bneck = block["bottleneck"] is not None
    if has_bneck:
        wb, bb = block["bottleneck"]                    # (1,1,Cin,B) HWIO, (B,)
        wb2 = jnp.transpose(wb[0, 0], (1, 0))           # (B, Cin)
        bb2 = bb.reshape(-1, 1)
        cur0 = int(wb2.shape[0])
        args += [wb2, bb2]
        in_specs += [pl.BlockSpec((cur0, Cin), lambda n: (0, 0)),
                     pl.BlockSpec((cur0, 1), lambda n: (0, 0))]
    else:
        cur0 = Cin

    layer_dils = []
    cur = cur0
    kmax = 8
    for dils, convs in block["layers"]:
        cur_p = _round_up(cur, 8)
        wparts, bsum = [], None
        for (w, b) in convs:                            # w: (3,3,cur,k) HWIO
            wf = jnp.transpose(w, (3, 0, 1, 2))         # (k,3,3,cur)
            wf = jnp.pad(wf, ((0, 0), (0, 0), (0, 0), (0, cur_p - cur)))
            wparts.append(wf.reshape(k, 9 * cur_p))
            bsum = b if bsum is None else bsum + b
        wfused = jnp.concatenate(wparts, axis=1)        # (k, 9*len(dils)*cur_p)
        bfused = bsum.reshape(k, 1)
        args += [wfused, bfused]
        kf = int(wfused.shape[1])
        in_specs += [pl.BlockSpec((k, kf), lambda n: (0, 0)),
                     pl.BlockSpec((k, 1), lambda n: (0, 0))]
        layer_dils.append(tuple(int(d) for d in dils))
        kmax = max(kmax, kf)
        cur += k
    cout = cur

    kernel = functools.partial(
        _d2_block_kernel, has_bneck=has_bneck, cur0=cur0, k=k,
        layer_dils=tuple(layer_dils), Wp=Wp, HWp=HWp, base=base)

    return pl.pallas_call(
        kernel,
        out_shape=jax.ShapeDtypeStruct((N, cout, S), jnp.float32),
        grid=(N,),
        in_specs=in_specs,
        out_specs=pl.BlockSpec((None, cout, S), lambda n: (n, 0, 0)),
        scratch_shapes=[pltpu.VMEM((kmax, HWp), jnp.float32)],
        compiler_params=pltpu.CompilerParams(
            dimension_semantics=("parallel",),          # batch axis -> both TCs on v7x
            vmem_limit_bytes=64 * 1024 * 1024),
    )(x_int, *args)


# ----------------------------------------------------------------------------
# Deterministic parameter construction mirroring D3Block.__init__
# ----------------------------------------------------------------------------
def _conv_init(key, cin, cout, ks):
    wkey, bkey = jax.random.split(key)
    bound = 1.0 / math.sqrt(cin * ks * ks)
    w = jax.random.uniform(wkey, (ks, ks, cin, cout), jnp.float32, -bound, bound)  # HWIO
    b = jax.random.uniform(bkey, (cout,), jnp.float32, -bound, bound)
    return w, b


def init_d3block(key, in_channels, M, L, k, B=None):
    if B is None:
        B = 4 * k
    dils_all = [2 ** i for i in range(L)]
    blocks = []
    cin = in_channels
    for _ in range(M):
        block = {}
        cur = cin
        if cur > B:                                   # D2Block bottleneck (1x1 conv)
            key, sub = jax.random.split(key)
            block["bottleneck"] = _conv_init(sub, cur, B, 1)
            cur = B
        else:
            block["bottleneck"] = None
        layers = []
        for i in range(L):                            # MultidilatedConv2dBlock per layer
            sel = tuple(dils_all[: i + 1])
            convs = []
            for _d in sel:
                key, sub = jax.random.split(key)
                convs.append(_conv_init(sub, cur, k, 3))   # out_channels - in_channels = k
            layers.append((sel, convs))
            cur += k
        block["layers"] = layers
        blocks.append(block)
        cin = (B + k * L) if cin > B else (cin + k * L)
    return blocks


# ----------------------------------------------------------------------------
# Forward pass (Pallas) and pure-JAX reference
# ----------------------------------------------------------------------------
def d3block_forward(params, x_nchw):
    N, C, H, W = x_nchw.shape
    k = int(params[0]["layers"][0][1][0][0].shape[-1])
    P = max(max(dils) for block in params for (dils, _c) in block["layers"])
    Wp, S, _base, lead = _layout(H, W, P)

    # NCHW -> internal (N, C, S): pad once, zero halos + guard rows, flatten spatial.
    xp = jnp.pad(x_nchw.astype(jnp.float32),
                 ((0, 0), (0, 0), (P + 1, P + 1), (P, P)))
    x_int = xp.reshape(N, C, (H + 2 * P + 2) * Wp)
    x_int = jnp.pad(x_int, ((0, 0), (0, 0), (lead, 0)))

    for block in params:
        x_int = _d2_block_pallas(x_int, block, H=H, W=W, P=P, k=k)

    cf = x_int.shape[1]
    out = x_int[:, :, lead:].reshape(N, cf, H + 2 * P + 2, Wp)
    return out[:, :, P + 1:P + 1 + H, P:P + W]        # already NCHW


def _conv_ref(x, w, b, ks, d):
    pad = d * (ks - 1) // 2
    y = jax.lax.conv_general_dilated(
        x, w, window_strides=(1, 1), padding=[(pad, pad), (pad, pad)],
        rhs_dilation=(d, d), dimension_numbers=("NHWC", "HWIO", "NHWC"))
    return y + b


def d3block_ref(params, x_nchw):
    x = jnp.transpose(x_nchw, (0, 2, 3, 1)).astype(jnp.float32)
    for block in params:
        if block["bottleneck"] is not None:
            w, b = block["bottleneck"]
            x = _conv_ref(x, w, b, 1, 1)
        for dils, convs in block["layers"]:
            out = None
            for d, (w, b) in zip(dils, convs):
                y = _conv_ref(x, w, b, 3, d)
                out = y if out is None else out + y
            x = jnp.concatenate([x, out], axis=-1)
    return jnp.transpose(x, (0, 3, 1, 2))


if __name__ == "__main__":
    key = jax.random.PRNGKey(0)
    pkey, xkey = jax.random.split(key)

    # Small config: D3Block(in_channels=4, M=2, L=2, k=4, B=8)
    N, Cin, H, W = 2, 4, 16, 16
    M, L, k, B = 2, 2, 4, 8
    params = init_d3block(pkey, Cin, M, L, k, B)
    x = jax.random.normal(xkey, (N, Cin, H, W), jnp.float32)

    out = jax.block_until_ready(d3block_forward(params, x))
    ref = jax.block_until_ready(d3block_ref(params, x))

    assert out.shape == ref.shape, (out.shape, ref.shape)
    if not np.allclose(np.asarray(out), np.asarray(ref), rtol=1e-4, atol=1e-4):
        raise AssertionError("Pallas D3Block output mismatch vs reference")
    print("KERNEL_OK")
</pallas_src>

<mosaic_0001>
module attributes {stable_mosaic.version = 11 : i64} {
  func.func @_d2_block_kernel(%arg0: i32, %arg1: memref<1x4x508xf32, #tpu.memory_space<vmem>>, %arg2: memref<1x320xf32, #tpu.memory_space<vmem>>, %arg3: memref<4x72xf32, #tpu.memory_space<vmem>>, %arg4: memref<4x1xf32, #tpu.memory_space<vmem>>, %arg5: memref<4x144xf32, #tpu.memory_space<vmem>>, %arg6: memref<4x1xf32, #tpu.memory_space<vmem>>, %arg7: memref<1x12x508xf32, #tpu.memory_space<vmem>>, %arg8: memref<144x320xf32, #tpu.memory_space<vmem>>) attributes {dimension_semantics = [#tpu.dimension_semantics<parallel>], iteration_bounds = array<i64: 2>, scalar_prefetch = 0 : i64, scratch_operands = 1 : i64, tpu.core_type = #tpu.core_type<tc>, window_params = [{transform_indices = @transform_0, window_bounds = array<i64: 1, 4, 508>}, {pipeline_mode = #tpu.pipeline_mode<synchronous>, transform_indices = @transform_1, window_bounds = array<i64: 1, 320>}, {pipeline_mode = #tpu.pipeline_mode<synchronous>, transform_indices = @transform_2, window_bounds = array<i64: 4, 72>}, {pipeline_mode = #tpu.pipeline_mode<synchronous>, transform_indices = @transform_3, window_bounds = array<i64: 4, 1>}, {pipeline_mode = #tpu.pipeline_mode<synchronous>, transform_indices = @transform_4, window_bounds = array<i64: 4, 144>}, {pipeline_mode = #tpu.pipeline_mode<synchronous>, transform_indices = @transform_5, window_bounds = array<i64: 4, 1>}, {transform_indices = @transform_6, window_bounds = array<i64: 1, 12, 508>}]} {
    %cst = arith.constant 0.000000e+00 : f32
    %0 = vector.broadcast %cst : f32 to vector<12x508xf32>
    %c0 = arith.constant 0 : index
    %c0_0 = arith.constant 0 : index
    %c0_1 = arith.constant 0 : index
    %1 = vector.load %arg7[%c0, %c0_0, %c0_1] : memref<1x12x508xf32, #tpu.memory_space<vmem>>, vector<1x12x508xf32>
    %2 = vector.shape_cast %1 : vector<1x12x508xf32> to vector<12x508xf32>
    %3 = vector.shape_cast %0 : vector<12x508xf32> to vector<1x12x508xf32>
    tpu.vector_store %arg7[%c0, %c0_0, %c0_1], %3 {strides = array<i32>} : memref<1x12x508xf32, #tpu.memory_space<vmem>>, vector<1x12x508xf32>,
    %cst_2 = arith.constant 0.000000e+00 : f32
    %4 = vector.broadcast %cst_2 : f32 to vector<144x320xf32>
    %c0_3 = arith.constant 0 : index
    %c0_4 = arith.constant 0 : index
    %5 = vector.load %arg8[%c0_3, %c0_4] : memref<144x320xf32, #tpu.memory_space<vmem>>, vector<144x320xf32>
    tpu.vector_store %arg8[%c0_3, %c0_4], %4 {strides = array<i32>} : memref<144x320xf32, #tpu.memory_space<vmem>>, vector<144x320xf32>,
    %c0_5 = arith.constant 0 : index
    %c0_6 = arith.constant 0 : index
    %6 = vector.load %arg2[%c0_5, %c0_6] : memref<1x320xf32, #tpu.memory_space<vmem>>, vector<1x320xf32>
    %c0_7 = arith.constant 0 : index
    %c0_8 = arith.constant 0 : index
    %c0_9 = arith.constant 0 : index
    %7 = vector.load %arg1[%c0_7, %c0_8, %c0_9] : memref<1x4x508xf32, #tpu.memory_space<vmem>>, vector<1x4x508xf32>
    %8 = vector.shape_cast %7 : vector<1x4x508xf32> to vector<4x508xf32>
    %c0_10 = arith.constant 0 : index
    %c0_11 = arith.constant 0 : index
    %c0_12 = arith.constant 0 : index
    %9 = vector.load %arg7[%c0_10, %c0_11, %c0_12] : memref<1x12x508xf32, #tpu.memory_space<vmem>>, vector<1x4x508xf32>
    %10 = vector.shape_cast %9 : vector<1x4x508xf32> to vector<4x508xf32>
    %11 = vector.shape_cast %8 : vector<4x508xf32> to vector<1x4x508xf32>
    tpu.vector_store %arg7[%c0_10, %c0_11, %c0_12], %11 {strides = array<i32>} : memref<1x12x508xf32, #tpu.memory_space<vmem>>, vector<1x4x508xf32>,
    %c0_13 = arith.constant 0 : index
    %c0_14 = arith.constant 0 : index
    %12 = vector.load %arg3[%c0_13, %c0_14] : memref<4x72xf32, #tpu.memory_space<vmem>>, vector<4x72xf32>
    %c0_15 = arith.constant 0 : index
    %c0_16 = arith.constant 0 : index
    %13 = vector.load %arg4[%c0_15, %c0_16] : memref<4x1xf32, #tpu.memory_space<vmem>>, vector<4x1xf32>
    %c0_17 = arith.constant 0 : index
    %c0_18 = arith.constant 0 : index
    %c107 = arith.constant 107 : index
    %14 = vector.load %arg7[%c0_17, %c0_18, %c107] : memref<1x12x508xf32, #tpu.memory_space<vmem>>, vector<1x4x320xf32>
    %15 = vector.shape_cast %14 : vector<1x4x320xf32> to vector<4x320xf32>
    %c0_19 = arith.constant 0 : index
    %c0_20 = arith.constant 0 : index
    %16 = vector.load %arg8[%c0_19, %c0_20] : memref<144x320xf32, #tpu.memory_space<vmem>>, vector<4x320xf32>
    tpu.vector_store %arg8[%c0_19, %c0_20], %15 {strides = array<i32>} : memref<144x320xf32, #tpu.memory_space<vmem>>, vector<4x320xf32>,
    %c0_21 = arith.constant 0 : index
    %c0_22 = arith.constant 0 : index
    %c108 = arith.constant 108 : index
    %17 = vector.load %arg7[%c0_21, %c0_22, %c108] : memref<1x12x508xf32, #tpu.memory_space<vmem>>, vector<1x4x320xf32>
    %18 = vector.shape_cast %17 : vector<1x4x320xf32> to vector<4x320xf32>
    %c8 = arith.constant 8 : index
    %c0_23 = arith.constant 0 : index
    %19 = vector.load %arg8[%c8, %c0_23] : memref<144x320xf32, #tpu.memory_space<vmem>>, vector<4x320xf32>
    tpu.vector_store %arg8[%c8, %c0_23], %18 {strides = array<i32>} : memref<144x320xf32, #tpu.memory_space<vmem>>, vector<4x320xf32>,
    %c0_24 = arith.constant 0 : index
    %c0_25 = arith.constant 0 : index
    %c109 = arith.constant 109 : index
    %20 = vector.load %arg7[%c0_24, %c0_25, %c109] : memref<1x12x508xf32, #tpu.memory_space<vmem>>, vector<1x4x320xf32>
    %21 = vector.shape_cast %20 : vector<1x4x320xf32> to vector<4x320xf32>
    %c16 = arith.constant 16 : index
    %c0_26 = arith.constant 0 : index
    %22 = vector.load %arg8[%c16, %c0_26] : memref<144x320xf32, #tpu.memory_space<vmem>>, vector<4x320xf32>
    tpu.vector_store %arg8[%c16, %c0_26], %21 {strides = array<i32>} : memref<144x320xf32, #tpu.memory_space<vmem>>, vector<4x320xf32>,
    %c0_27 = arith.constant 0 : index
    %c0_28 = arith.constant 0 : index
    %c127 = arith.constant 127 : index
    %23 = vector.load %arg7[%c0_27, %c0_28, %c127] : memref<1x12x508xf32, #tpu.memory_space<vmem>>, vector<1x4x320xf32>
    %24 = vector.shape_cast %23 : vector<1x4x320xf32> to vector<4x320xf32>
    %c24 = arith.constant 24 : index
    %c0_29 = arith.constant 0 : index
    %25 = vector.load %arg8[%c24, %c0_29] : memref<144x320xf32, #tpu.memory_space<vmem>>, vector<4x320xf32>
    tpu.vector_store %arg8[%c24, %c0_29], %24 {strides = array<i32>} : memref<144x320xf32, #tpu.memory_space<vmem>>, vector<4x320xf32>,
    %c0_30 = arith.constant 0 : index
    %c0_31 = arith.constant 0 : index
    %c128 = arith.constant 128 : index
    %26 = vector.load %arg7[%c0_30, %c0_31, %c128] : memref<1x12x508xf32, #tpu.memory_space<vmem>>, vector<1x4x320xf32>
    %27 = vector.shape_cast %26 : vector<1x4x320xf32> to vector<4x320xf32>
    %c32 = arith.constant 32 : index
    %c0_32 = arith.constant 0 : index
    %28 = vector.load %arg8[%c32, %c0_32] : memref<144x320xf32, #tpu.memory_space<vmem>>, vector<4x320xf32>
    tpu.vector_store %arg8[%c32, %c0_32], %27 {strides = array<i32>} : memref<144x320xf32, #tpu.memory_space<vmem>>, vector<4x320xf32>,
    %c0_33 = arith.constant 0 : index
    %c0_34 = arith.constant 0 : index
    %c129 = arith.constant 129 : index
    %29 = vector.load %arg7[%c0_33, %c0_34, %c129] : memref<1x12x508xf32, #tpu.memory_space<vmem>>, vector<1x4x320xf32>
    %30 = vector.shape_cast %29 : vector<1x4x320xf32> to vector<4x320xf32>
    %c40 = arith.constant 40 : index
    %c0_35 = arith.constant 0 : index
    %31 = vector.load %arg8[%c40, %c0_35] : memref<144x320xf32, #tpu.memory_space<vmem>>, vector<4x320xf32>
    tpu.vector_store %arg8[%c40, %c0_35], %30 {strides = array<i32>} : memref<144x320xf32, #tpu.memory_space<vmem>>, vector<4x320xf32>,
    %c0_36 = arith.constant 0 : index
    %c0_37 = arith.constant 0 : index
    %c147 = arith.constant 147 : index
    %32 = vector.load %arg7[%c0_36, %c0_37, %c147] : memref<1x12x508xf32, #tpu.memory_space<vmem>>, vector<1x4x320xf32>
    %33 = vector.shape_cast %32 : vector<1x4x320xf32> to vector<4x320xf32>
    %c48 = arith.constant 48 : index
    %c0_38 = arith.constant 0 : index
    %34 = vector.load %arg8[%c48, %c0_38] : memref<144x320xf32, #tpu.memory_space<vmem>>, vector<4x320xf32>
    tpu.vector_store %arg8[%c48, %c0_38], %33 {strides = array<i32>} : memref<144x320xf32, #tpu.memory_space<vmem>>, vector<4x320xf32>,
    %c0_39 = arith.constant 0 : index
    %c0_40 = arith.constant 0 : index
    %c148 = arith.constant 148 : index
    %35 = vector.load %arg7[%c0_39, %c0_40, %c148] : memref<1x12x508xf32, #tpu.memory_space<vmem>>, vector<1x4x320xf32>
    %36 = vector.shape_cast %35 : vector<1x4x320xf32> to vector<4x320xf32>
    %c56 = arith.constant 56 : index
    %c0_41 = arith.constant 0 : index
    %37 = vector.load %arg8[%c56, %c0_41] : memref<144x320xf32, #tpu.memory_space<vmem>>, vector<4x320xf32>
    tpu.vector_store %arg8[%c56, %c0_41], %36 {strides = array<i32>} : memref<144x320xf32, #tpu.memory_space<vmem>>, vector<4x320xf32>,
    %c0_42 = arith.constant 0 : index
    %c0_43 = arith.constant 0 : index
    %c149 = arith.constant 149 : index
    %38 = vector.load %arg7[%c0_42, %c0_43, %c149] : memref<1x12x508xf32, #tpu.memory_space<vmem>>, vector<1x4x320xf32>
    %39 = vector.shape_cast %38 : vector<1x4x320xf32> to vector<4x320xf32>
    %c64 = arith.constant 64 : index
    %c0_44 = arith.constant 0 : index
    %40 = vector.load %arg8[%c64, %c0_44] : memref<144x320xf32, #tpu.memory_space<vmem>>, vector<4x320xf32>
    tpu.vector_store %arg8[%c64, %c0_44], %39 {strides = array<i32>} : memref<144x320xf32, #tpu.memory_space<vmem>>, vector<4x320xf32>,
    %c0_45 = arith.constant 0 : index
    %c0_46 = arith.constant 0 : index
    %41 = vector.load %arg8[%c0_45, %c0_46] : memref<144x320xf32, #tpu.memory_space<vmem>>, vector<72x320xf32>
    %cst_47 = arith.constant dense<0.000000e+00> : vector<4x320xf32>
    %42 = tpu.matmul %12, %41, %cst_47 {dimension_numbers = #tpu.dot_dimension_numbers<[1], [0], [0], [1], [0, 0, 1, 1], [], []>} : vector<4x72xf32>, vector<72x320xf32>, vector<4x320xf32> -> vector<4x320xf32>
    %43 = vector.broadcast %13 : vector<4x1xf32> to vector<4x320xf32>
    %44 = arith.addf %42, %43 : vector<4x320xf32>
    %45 = vector.broadcast %6 : vector<1x320xf32> to vector<4x320xf32>
    %46 = arith.mulf %44, %45 : vector<4x320xf32>
    %c0_48 = arith.constant 0 : index
    %c4 = arith.constant 4 : index
    %c128_49 = arith.constant 128 : index
    %47 = vector.load %arg7[%c0_48, %c4, %c128_49] : memref<1x12x508xf32, #tpu.memory_space<vmem>>, vector<1x4x320xf32>
    %48 = vector.shape_cast %47 : vector<1x4x320xf32> to vector<4x320xf32>
    %49 = vector.shape_cast %46 : vector<4x320xf32> to vector<1x4x320xf32>
    tpu.vector_store %arg7[%c0_48, %c4, %c128_49], %49 {strides = array<i32>} : memref<1x12x508xf32, #tpu.memory_space<vmem>>, vector<1x4x320xf32>,
    %c0_50 = arith.constant 0 : index
    %c0_51 = arith.constant 0 : index
    %50 = vector.load %arg5[%c0_50, %c0_51] : memref<4x144xf32, #tpu.memory_space<vmem>>, vector<4x144xf32>
    %c0_52 = arith.constant 0 : index
    %c0_53 = arith.constant 0 : index
    %51 = vector.load %arg6[%c0_52, %c0_53] : memref<4x1xf32, #tpu.memory_space<vmem>>, vector<4x1xf32>
    %c0_54 = arith.constant 0 : index
    %c0_55 = arith.constant 0 : index
    %c107_56 = arith.constant 107 : index
    %52 = vector.load %arg7[%c0_54, %c0_55, %c107_56] : memref<1x12x508xf32, #tpu.memory_space<vmem>>, vector<1x8x320xf32>
    %53 = vector.shape_cast %52 : vector<1x8x320xf32> to vector<8x320xf32>
    %c0_57 = arith.constant 0 : index
    %c0_58 = arith.constant 0 : index
    %54 = vector.load %arg8[%c0_57, %c0_58] : memref<144x320xf32, #tpu.memory_space<vmem>>, vector<8x320xf32>
    tpu.vector_store %arg8[%c0_57, %c0_58], %53 {strides = array<i32>} : memref<144x320xf32, #tpu.memory_space<vmem>>, vector<8x320xf32>,
    %c0_59 = arith.constant 0 : index
    %c0_60 = arith.constant 0 : index
    %c108_61 = arith.constant 108 : index
    %55 = vector.load %arg7[%c0_59, %c0_60, %c108_61] : memref<1x12x508xf32, #tpu.memory_space<vmem>>, vector<1x8x320xf32>
    %56 = vector.shape_cast %55 : vector<1x8x320xf32> to vector<8x320xf32>
    %c8_62 = arith.constant 8 : index
    %c0_63 = arith.constant 0 : index
    %57 = vector.load %arg8[%c8_62, %c0_63] : memref<144x320xf32, #tpu.memory_space<vmem>>, vector<8x320xf32>
    tpu.vector_store %arg8[%c8_62, %c0_63], %56 {strides = array<i32>} : memref<144x320xf32, #tpu.memory_space<vmem>>, vector<8x320xf32>,
    %c0_64 = arith.constant 0 : index
    %c0_65 = arith.constant 0 : index
    %c109_66 = arith.constant 109 : index
    %58 = vector.load %arg7[%c0_64, %c0_65, %c109_66] : memref<1x12x508xf32, #tpu.memory_space<vmem>>, vector<1x8x320xf32>
    %59 = vector.shape_cast %58 : vector<1x8x320xf32> to vector<8x320xf32>
    %c16_67 = arith.constant 16 : index
    %c0_68 = arith.constant 0 : index
    %60 = vector.load %arg8[%c16_67, %c0_68] : memref<144x320xf32, #tpu.memory_space<vmem>>, vector<8x320xf32>
    tpu.vector_store %arg8[%c16_67, %c0_68], %59 {strides = array<i32>} : memref<144x320xf32, #tpu.memory_space<vmem>>, vector<8x320xf32>,
    %c0_69 = arith.constant 0 : index
    %c0_70 = arith.constant 0 : index
    %c127_71 = arith.constant 127 : index
    %61 = vector.load %arg7[%c0_69, %c0_70, %c127_71] : memref<1x12x508xf32, #tpu.memory_space<vmem>>, vector<1x8x320xf32>
    %62 = vector.shape_cast %61 : vector<1x8x320xf32> to vector<8x320xf32>
    %c24_72 = arith.constant 24 : index
    %c0_73 = arith.constant 0 : index
    %63 = vector.load %arg8[%c24_72, %c0_73] : memref<144x320xf32, #tpu.memory_space<vmem>>, vector<8x320xf32>
    tpu.vector_store %arg8[%c24_72, %c0_73], %62 {strides = array<i32>} : memref<144x320xf32, #tpu.memory_space<vmem>>, vector<8x320xf32>,
    %c0_74 = arith.constant 0 : index
    %c0_75 = arith.constant 0 : index
    %c128_76 = arith.constant 128 : index
    %64 = vector.load %arg7[%c0_74, %c0_75, %c128_76] : memref<1x12x508xf32, #tpu.memory_space<vmem>>, vector<1x8x320xf32>
    %65 = vector.shape_cast %64 : vector<1x8x320xf32> to vector<8x320xf32>
    %c32_77 = arith.constant 32 : index
    %c0_78 = arith.constant 0 : index
    %66 = vector.load %arg8[%c32_77, %c0_78] : memref<144x320xf32, #tpu.memory_space<vmem>>, vector<8x320xf32>
    tpu.vector_store %arg8[%c32_77, %c0_78], %65 {strides = array<i32>} : memref<144x320xf32, #tpu.memory_space<vmem>>, vector<8x320xf32>,
    %c0_79 = arith.constant 0 : index
    %c0_80 = arith.constant 0 : index
    %c129_81 = arith.constant 129 : index
    %67 = vector.load %arg7[%c0_79, %c0_80, %c129_81] : memref<1x12x508xf32, #tpu.memory_space<vmem>>, vector<1x8x320xf32>
    %68 = vector.shape_cast %67 : vector<1x8x320xf32> to vector<8x320xf32>
    %c40_82 = arith.constant 40 : index
    %c0_83 = arith.constant 0 : index
    %69 = vector.load %arg8[%c40_82, %c0_83] : memref<144x320xf32, #tpu.memory_space<vmem>>, vector<8x320xf32>
    tpu.vector_store %arg8[%c40_82, %c0_83], %68 {strides = array<i32>} : memref<144x320xf32, #tpu.memory_space<vmem>>, vector<8x320xf32>,
    %c0_84 = arith.constant 0 : index
    %c0_85 = arith.constant 0 : index
    %c147_86 = arith.constant 147 : index
    %70 = vector.load %arg7[%c0_84, %c0_85, %c147_86] : memref<1x12x508xf32, #tpu.memory_space<vmem>>, vector<1x8x320xf32>
    %71 = vector.shape_cast %70 : vector<1x8x320xf32> to vector<8x320xf32>
    %c48_87 = arith.constant 48 : index
    %c0_88 = arith.constant 0 : index
    %72 = vector.load %arg8[%c48_87, %c0_88] : memref<144x320xf32, #tpu.memory_space<vmem>>, vector<8x320xf32>
    tpu.vector_store %arg8[%c48_87, %c0_88], %71 {strides = array<i32>} : memref<144x320xf32, #tpu.memory_space<vmem>>, vector<8x320xf32>,
    %c0_89 = arith.constant 0 : index
    %c0_90 = arith.constant 0 : index
    %c148_91 = arith.constant 148 : index
    %73 = vector.load %arg7[%c0_89, %c0_90, %c148_91] : memref<1x12x508xf32, #tpu.memory_space<vmem>>, vector<1x8x320xf32>
    %74 = vector.shape_cast %73 : vector<1x8x320xf32> to vector<8x320xf32>
    %c56_92 = arith.constant 56 : index
    %c0_93 = arith.constant 0 : index
    %75 = vector.load %arg8[%c56_92, %c0_93] : memref<144x320xf32, #tpu.memory_space<vmem>>, vector<8x320xf32>
    tpu.vector_store %arg8[%c56_92, %c0_93], %74 {strides = array<i32>} : memref<144x320xf32, #tpu.memory_space<vmem>>, vector<8x320xf32>,
    %c0_94 = arith.constant 0 : index
    %c0_95 = arith.constant 0 : index
    %c149_96 = arith.constant 149 : index
    %76 = vector.load %arg7[%c0_94, %c0_95, %c149_96] : memref<1x12x508xf32, #tpu.memory_space<vmem>>, vector<1x8x320xf32>
    %77 = vector.shape_cast %76 : vector<1x8x320xf32> to vector<8x320xf32>
    %c64_97 = arith.constant 64 : index
    %c0_98 = arith.constant 0 : index
    %78 = vector.load %arg8[%c64_97, %c0_98] : memref<144x320xf32, #tpu.memory_space<vmem>>, vector<8x320xf32>
    tpu.vector_store %arg8[%c64_97, %c0_98], %77 {strides = array<i32>} : memref<144x320xf32, #tpu.memory_space<vmem>>, vector<8x320xf32>,
    %c0_99 = arith.constant 0 : index
    %c0_100 = arith.constant 0 : index
    %c86 = arith.constant 86 : index
    %79 = vector.load %arg7[%c0_99, %c0_100, %c86] : memref<1x12x508xf32, #tpu.memory_space<vmem>>, vector<1x8x320xf32>
    %80 = vector.shape_cast %79 : vector<1x8x320xf32> to vector<8x320xf32>
    %c72 = arith.constant 72 : index
    %c0_101 = arith.constant 0 : index
    %81 = vector.load %arg8[%c72, %c0_101] : memref<144x320xf32, #tpu.memory_space<vmem>>, vector<8x320xf32>
    tpu.vector_store %arg8[%c72, %c0_101], %80 {strides = array<i32>} : memref<144x320xf32, #tpu.memory_space<vmem>>, vector<8x320xf32>,
    %c0_102 = arith.constant 0 : index
    %c0_103 = arith.constant 0 : index
    %c88 = arith.constant 88 : index
    %82 = vector.load %arg7[%c0_102, %c0_103, %c88] : memref<1x12x508xf32, #tpu.memory_space<vmem>>, vector<1x8x320xf32>
    %83 = vector.shape_cast %82 : vector<1x8x320xf32> to vector<8x320xf32>
    %c80 = arith.constant 80 : index
    %c0_104 = arith.constant 0 : index
    %84 = vector.load %arg8[%c80, %c0_104] : memref<144x320xf32, #tpu.memory_space<vmem>>, vector<8x320xf32>
    tpu.vector_store %arg8[%c80, %c0_104], %83 {strides = array<i32>} : memref<144x320xf32, #tpu.memory_space<vmem>>, vector<8x320xf32>,
    %c0_105 = arith.constant 0 : index
    %c0_106 = arith.constant 0 : index
    %c90 = arith.constant 90 : index
    %85 = vector.load %arg7[%c0_105, %c0_106, %c90] : memref<1x12x508xf32, #tpu.memory_space<vmem>>, vector<1x8x320xf32>
    %86 = vector.shape_cast %85 : vector<1x8x320xf32> to vector<8x320xf32>
    %c88_107 = arith.constant 88 : index
    %c0_108 = arith.constant 0 : index
    %87 = vector.load %arg8[%c88_107, %c0_108] : memref<144x320xf32, #tpu.memory_space<vmem>>, vector<8x320xf32>
    tpu.vector_store %arg8[%c88_107, %c0_108], %86 {strides = array<i32>} : memref<144x320xf32, #tpu.memory_space<vmem>>, vector<8x320xf32>,
    %c0_109 = arith.constant 0 : index
    %c0_110 = arith.constant 0 : index
    %c126 = arith.constant 126 : index
    %88 = vector.load %arg7[%c0_109, %c0_110, %c126] : memref<1x12x508xf32, #tpu.memory_space<vmem>>, vector<1x8x320xf32>
    %89 = vector.shape_cast %88 : vector<1x8x320xf32> to vector<8x320xf32>
    %c96 = arith.constant 96 : index
    %c0_111 = arith.constant 0 : index
    %90 = vector.load %arg8[%c96, %c0_111] : memref<144x320xf32, #tpu.memory_space<vmem>>, vector<8x320xf32>
    tpu.vector_store %arg8[%c96, %c0_111], %89 {strides = array<i32>} : memref<144x320xf32, #tpu.memory_space<vmem>>, vector<8x320xf32>,
    %c0_112 = arith.constant 0 : index
    %c0_113 = arith.constant 0 : index
    %c128_114 = arith.constant 128 : index
    %91 = vector.load %arg7[%c0_112, %c0_113, %c128_114] : memref<1x12x508xf32, #tpu.memory_space<vmem>>, vector<1x8x320xf32>
    %92 = vector.shape_cast %91 : vector<1x8x320xf32> to vector<8x320xf32>
    %c104 = arith.constant 104 : index
    %c0_115 = arith.constant 0 : index
    %93 = vector.load %arg8[%c104, %c0_115] : memref<144x320xf32, #tpu.memory_space<vmem>>, vector<8x320xf32>
    tpu.vector_store %arg8[%c104, %c0_115], %92 {strides = array<i32>} : memref<144x320xf32, #tpu.memory_space<vmem>>, vector<8x320xf32>,
    %c0_116 = arith.constant 0 : index
    %c0_117 = arith.constant 0 : index
    %c130 = arith.constant 130 : index
    %94 = vector.load %arg7[%c0_116, %c0_117, %c130] : memref<1x12x508xf32, #tpu.memory_space<vmem>>, vector<1x8x320xf32>
    %95 = vector.shape_cast %94 : vector<1x8x320xf32> to vector<8x320xf32>
    %c112 = arith.constant 112 : index
    %c0_118 = arith.constant 0 : index
    %96 = vector.load %arg8[%c112, %c0_118] : memref<144x320xf32, #tpu.memory_space<vmem>>, vector<8x320xf32>
    tpu.vector_store %arg8[%c112, %c0_118], %95 {strides = array<i32>} : memref<144x320xf32, #tpu.memory_space<vmem>>, vector<8x320xf32>,
    %c0_119 = arith.constant 0 : index
    %c0_120 = arith.constant 0 : index
    %c166 = arith.constant 166 : index
    %97 = vector.load %arg7[%c0_119, %c0_120, %c166] : memref<1x12x508xf32, #tpu.memory_space<vmem>>, vector<1x8x320xf32>
    %98 = vector.shape_cast %97 : vector<1x8x320xf32> to vector<8x320xf32>
    %c120 = arith.constant 120 : index
    %c0_121 = arith.constant 0 : index
    %99 = vector.load %arg8[%c120, %c0_121] : memref<144x320xf32, #tpu.memory_space<vmem>>, vector<8x320xf32>
    tpu.vector_store %arg8[%c120, %c0_121], %98 {strides = array<i32>} : memref<144x320xf32, #tpu.memory_space<vmem>>, vector<8x320xf32>,
    %c0_122 = arith.constant 0 : index
    %c0_123 = arith.constant 0 : index
    %c168 = arith.constant 168 : index
    %100 = vector.load %arg7[%c0_122, %c0_123, %c168] : memref<1x12x508xf32, #tpu.memory_space<vmem>>, vector<1x8x320xf32>
    %101 = vector.shape_cast %100 : vector<1x8x320xf32> to vector<8x320xf32>
    %c128_124 = arith.constant 128 : index
    %c0_125 = arith.constant 0 : index
    %102 = vector.load %arg8[%c128_124, %c0_125] : memref<144x320xf32, #tpu.memory_space<vmem>>, vector<8x320xf32>
    tpu.vector_store %arg8[%c128_124, %c0_125], %101 {strides = array<i32>} : memref<144x320xf32, #tpu.memory_space<vmem>>, vector<8x320xf32>,
    %c0_126 = arith.constant 0 : index
    %c0_127 = arith.constant 0 : index
    %c170 = arith.constant 170 : index
    %103 = vector.load %arg7[%c0_126, %c0_127, %c170] : memref<1x12x508xf32, #tpu.memory_space<vmem>>, vector<1x8x320xf32>
    %104 = vector.shape_cast %103 : vector<1x8x320xf32> to vector<8x320xf32>
    %c136 = arith.constant 136 : index
    %c0_128 = arith.constant 0 : index
    %105 = vector.load %arg8[%c136, %c0_128] : memref<144x320xf32, #tpu.memory_space<vmem>>, vector<8x320xf32>
    tpu.vector_store %arg8[%c136, %c0_128], %104 {strides = array<i32>} : memref<144x320xf32, #tpu.memory_space<vmem>>, vector<8x320xf32>,
    %c0_129 = arith.constant 0 : index
    %c0_130 = arith.constant 0 : index
    %106 = vector.load %arg8[%c0_129, %c0_130] : memref<144x320xf32, #tpu.memory_space<vmem>>, vector<144x320xf32>
    %cst_131 = arith.constant dense<0.000000e+00> : vector<4x320xf32>
    %107 = tpu.matmul %50, %106, %cst_131 {dimension_numbers = #tpu.dot_dimension_numbers<[1], [0], [0], [1], [0, 0, 1, 1], [], []>} : vector<4x144xf32>, vector<144x320xf32>, vector<4x320xf32> -> vector<4x320xf32>
    %108 = vector.broadcast %51 : vector<4x1xf32> to vector<4x320xf32>
    %109 = arith.addf %107, %108 : vector<4x320xf32>
    %110 = vector.broadcast %6 : vector<1x320xf32> to vector<4x320xf32>
    %111 = arith.mulf %109, %110 : vector<4x320xf32>
    %c0_132 = arith.constant 0 : index
    %c8_133 = arith.constant 8 : index
    %c128_134 = arith.constant 128 : index
    %112 = vector.load %arg7[%c0_132, %c8_133, %c128_134] : memref<1x12x508xf32, #tpu.memory_space<vmem>>, vector<1x4x320xf32>
    %113 = vector.shape_cast %112 : vector<1x4x320xf32> to vector<4x320xf32>
    %114 = vector.shape_cast %111 : vector<4x320xf32> to vector<1x4x320xf32>
    tpu.vector_store %arg7[%c0_132, %c8_133, %c128_134], %114 {strides = array<i32>} : memref<1x12x508xf32, #tpu.memory_space<vmem>>, vector<1x4x320xf32>,
    return
  }
  func.func @transform_0(%arg0: i32) -> (i32, i32, i32) {
    %c0_i32 = arith.constant 0 : i32
    %c0_i32_0 = arith.constant 0 : i32
    %c0_i32_1 = arith.constant 0 : i32
    return %arg0, %c0_i32, %c0_i32_0 : i32, i32, i32
  }
  func.func @transform_1(%arg0: i32) -> (i32, i32) {
    %c0_i32 = arith.constant 0 : i32
    %c0_i32_0 = arith.constant 0 : i32
    %c0_i32_1 = arith.constant 0 : i32
    return %c0_i32, %c0_i32_0 : i32, i32
  }
  func.func @transform_2(%arg0: i32) -> (i32, i32) {
    %c0_i32 = arith.constant 0 : i32
    %c0_i32_0 = arith.constant 0 : i32
    %c0_i32_1 = arith.constant 0 : i32
    return %c0_i32, %c0_i32_0 : i32, i32
  }
  func.func @transform_3(%arg0: i32) -> (i32, i32) {
    %c0_i32 = arith.constant 0 : i32
    %c0_i32_0 = arith.constant 0 : i32
    %c0_i32_1 = arith.constant 0 : i32
    return %c0_i32, %c0_i32_0 : i32, i32
  }
  func.func @transform_4(%arg0: i32) -> (i32, i32) {
    %c0_i32 = arith.constant 0 : i32
    %c0_i32_0 = arith.constant 0 : i32
    %c0_i32_1 = arith.constant 0 : i32
    return %c0_i32, %c0_i32_0 : i32, i32
  }
  func.func @transform_5(%arg0: i32) -> (i32, i32) {
    %c0_i32 = arith.constant 0 : i32
    %c0_i32_0 = arith.constant 0 : i32
    %c0_i32_1 = arith.constant 0 : i32
    return %c0_i32, %c0_i32_0 : i32, i32
  }
  func.func @transform_6(%arg0: i32) -> (i32, i32, i32) {
    %c0_i32 = arith.constant 0 : i32
    %c0_i32_0 = arith.constant 0 : i32
    %c0_i32_1 = arith.constant 0 : i32
    return %arg0, %c0_i32, %c0_i32_0 : i32, i32, i32
  }
}

</mosaic_0001>

<llo_original>
// kernel: tpu_custom_call.1
$region0: #{tpu_custom_call.1}
  #allocation0 [shape = 'u32[]', space=smem, size = 0x4, offset = 0x4, fixed_abs, tag = 'smem constant byte address 0x4 - core index']
  #allocation1 [shape = 'u32[72,128]{1,0:T(1,128)}', space=vmem, size = 0x9000, scoped, tag = 'internal scratch']
  #allocation2 [shape = 'f32[144,320]{1,0:T(8,128)}', space=vmem, size = 0x36000, scoped, tag = 'scratch operand']
  %s0 = inlined_call_operand.hbm [shape: f32[2,4,508], index: 0, kind: input, shape index: {}]
  %s1 = inlined_call_operand.hbm [shape: f32[1,320], index: 1, kind: input, shape index: {}]
  %s2 = inlined_call_operand.hbm [shape: f32[4,72], index: 2, kind: input, shape index: {}]
  %s3 = inlined_call_operand.vmem [shape: f32[4,1], index: 3, kind: input, shape index: {}]
  %s4 = inlined_call_operand.vmem [shape: f32[4,144], index: 4, kind: input, shape index: {}]
  %s5 = inlined_call_operand.vmem [shape: f32[4,1], index: 5, kind: input, shape index: {}]
  %s6 = inlined_call_operand.vmem [shape: f32[2,12,508], index: 6, kind: output, shape index: {}]
  %s7 = sld [smem:[#allocation0]]
  $region69: #{tpu_custom_call.1} parent=0
    _
  %s9 = ssub.s32 1, %s7
  %s10 = scalar_select 0, %s9, %s7
  $region1: #{tpu_custom_call.1} parent=0
    #allocation3 [shape = 'u8[16384]{0}', space=vmem, size = 0x4000, scoped, tag = 'input window, operand 0']
    #allocation4 [shape = 's32[2]{0}', space=sflag, size = 0x8, scoped, tag = 'scoped memory for tpu_custom_call.1']
    #allocation5 [shape = 'u8[1536]{0}', space=vmem, size = 0x800, scoped, tag = 'input window, operand 1, single buffered']
    #allocation6 [shape = 's32[1]{0}', space=sflag, size = 0x4, scoped, tag = 'scoped memory for tpu_custom_call.1']
    #allocation7 [shape = 'u8[2048]{0}', space=vmem, size = 0x800, scoped, tag = 'input window, operand 2, single buffered']
    %11 = vsyncpa [#allocation4], 0
    %s12 = scalar_lea.sflag [#allocation4], 1
    %13 = vsyncpa %s12, 0
    %14 = vsyncpa [#allocation6], 0
    loop: start=0, step=1, limit=4
    $region2: #{tpu_custom_call.1} parent=1 // loop_pre_header
      _
    $region3: #{tpu_custom_call.1} parent=1 // loop_header
      %s16 = sphi 0, %s20
      %p17 = scmp.ge.s32.totalorder %s16, 4
      %s26 = sphi 0, %s28
      %s29 = sphi 0, %s26
      %s30 = sphi 0, %s29
      %s46 = sphi 0, %s30
      %s50 = sphi 0, %s50
      %s52 = sphi 0, %s50
      %s53 = sphi 0, %s52
      %s67 = sphi 0, %s53
      %s71 = sphi 0, %s71
      %s73 = sphi 0, %s71
      %s74 = sphi 0, %s73
      %s88 = sphi 0, %s74
      %s92 = sphi 0, %s92
      %s94 = sphi 0, %s92
      %s95 = sphi 0, %s94
      %s109 = sphi 0, %s95
      %s113 = sphi 0, %s113
      %s115 = sphi 0, %s113
      %s116 = sphi 0, %s115
      %s130 = sphi 0, %s116
      %s134 = sphi 0, %s134
      %s136 = sphi 0, %s134
      %s137 = sphi 0, %s136
      %s151 = sphi 0, %s137
      %s157 = sphi 0, %s159
      %s160 = sphi 0, %s157
      %s161 = sphi 0, %s160
      %s177 = sphi 0, %s161
    $region4: #{tpu_custom_call.1} parent=1 // loop_header_branch
      %19 = sbr.rel (%p17) target = $region8
    $region5: #{tpu_custom_call.1} parent=1 // loop_body
      %s21 = ssub.s32 %s16, 1
      %s22 = ssub.s32 %s16, 2
      %s23 = sadd.s32 %s16, 1
      %s24 = ssub.s32 %s16, %s23
      %p25 = scmp.eq.s32.totalorder %s24, 0
      %s27 = sadd.s32 %s26, 1
      %s28 = scalar_select %p25, %s26, %s27
      %p31 = pneg %p25
      %p32 = scmp.eq.s32.totalorder %s16, 1
      %p33 = por %p31, %p32
      %p34 = scmp.ne.s32.totalorder %s26, %s29
      %p35 = scmp.eq.s32.totalorder %s16, 0
      %p36 = por %p34, %p35
      %p37 = scmp.ne.s32.totalorder %s26, %s29
      %p38 = scmp.eq.s32.totalorder %s21, 1
      %p39 = por %p37, %p38
      %p40 = scmp.ne.s32.totalorder %s29, %s30
      %p41 = scmp.eq.s32.totalorder %s21, 0
      %p42 = por %p40, %p41
      %p43 = scmp.ne.s32.totalorder %s29, %s30
      %p44 = scmp.eq.s32.totalorder %s22, 1
      %p45 = por %p43, %p44
      %p47 = scmp.ne.s32.totalorder %s30, %s46
      %p48 = scmp.eq.s32.totalorder %s22, 0
      %p49 = por %p47, %p48
      %s51 = sadd.s32 %s50, 1
      %p54 = scmp.eq.s32.totalorder %s16, 1
      %p55 = scmp.ne.s32.totalorder %s50, %s52
      %p56 = scmp.eq.s32.totalorder %s16, 0
      %p57 = por %p55, %p56
      %p58 = scmp.ne.s32.totalorder %s50, %s52
      %p59 = scmp.eq.s32.totalorder %s21, 1
      %p60 = por %p58, %p59
      %p61 = scmp.ne.s32.totalorder %s52, %s53
      %p62 = scmp.eq.s32.totalorder %s21, 0
      %p63 = por %p61, %p62
      %p64 = scmp.ne.s32.totalorder %s52, %s53
      %p65 = scmp.eq.s32.totalorder %s22, 1
      %p66 = por %p64, %p65
      %p68 = scmp.ne.s32.totalorder %s53, %s67
      %p69 = scmp.eq.s32.totalorder %s22, 0
      %p70 = por %p68, %p69
      %s72 = sadd.s32 %s71, 1
      %p75 = scmp.eq.s32.totalorder %s16, 1
      %p76 = scmp.ne.s32.totalorder %s71, %s73
      %p77 = scmp.eq.s32.totalorder %s16, 0
      %p78 = por %p76, %p77
      %p79 = scmp.ne.s32.totalorder %s71, %s73
      %p80 = scmp.eq.s32.totalorder %s21, 1
      %p81 = por %p79, %p80
      %p82 = scmp.ne.s32.totalorder %s73, %s74
      %p83 = scmp.eq.s32.totalorder %s21, 0
      %p84 = por %p82, %p83
      %p85 = scmp.ne.s32.totalorder %s73, %s74
      %p86 = scmp.eq.s32.totalorder %s22, 1
      %p87 = por %p85, %p86
      %p89 = scmp.ne.s32.totalorder %s74, %s88
      %p90 = scmp.eq.s32.totalorder %s22, 0
      %p91 = por %p89, %p90
      %s93 = sadd.s32 %s92, 1
      %p96 = scmp.eq.s32.totalorder %s16, 1
      %p97 = scmp.ne.s32.totalorder %s92, %s94
      %p98 = scmp.eq.s32.totalorder %s16, 0
      %p99 = por %p97, %p98
      %p100 = scmp.ne.s32.totalorder %s92, %s94
      %p101 = scmp.eq.s32.totalorder %s21, 1
      %p102 = por %p100, %p101
      %p103 = scmp.ne.s32.totalorder %s94, %s95
      %p104 = scmp.eq.s32.totalorder %s21, 0
      %p105 = por %p103, %p104
      %p106 = scmp.ne.s32.totalorder %s94, %s95
      %p107 = scmp.eq.s32.totalorder %s22, 1
      %p108 = por %p106, %p107
      %p110 = scmp.ne.s32.totalorder %s95, %s109
      %p111 = scmp.eq.s32.totalorder %s22, 0
      %p112 = por %p110, %p111
      %s114 = sadd.s32 %s113, 1
      %p117 = scmp.eq.s32.totalorder %s16, 1
      %p118 = scmp.ne.s32.totalorder %s113, %s115
      %p119 = scmp.eq.s32.totalorder %s16, 0
      %p120 = por %p118, %p119
      %p121 = scmp.ne.s32.totalorder %s113, %s115
      %p122 = scmp.eq.s32.totalorder %s21, 1
      %p123 = por %p121, %p122
      %p124 = scmp.ne.s32.totalorder %s115, %s116
      %p125 = scmp.eq.s32.totalorder %s21, 0
      %p126 = por %p124, %p125
      %p127 = scmp.ne.s32.totalorder %s115, %s116
      %p128 = scmp.eq.s32.totalorder %s22, 1
      %p129 = por %p127, %p128
      %p131 = scmp.ne.s32.totalorder %s116, %s130
      %p132 = scmp.eq.s32.totalorder %s22, 0
      %p133 = por %p131, %p132
      %s135 = sadd.s32 %s134, 1
      %p138 = scmp.eq.s32.totalorder %s16, 1
      %p139 = scmp.ne.s32.totalorder %s134, %s136
      %p140 = scmp.eq.s32.totalorder %s16, 0
      %p141 = por %p139, %p140
      %p142 = scmp.ne.s32.totalorder %s134, %s136
      %p143 = scmp.eq.s32.totalorder %s21, 1
      %p144 = por %p142, %p143
      %p145 = scmp.ne.s32.totalorder %s136, %s137
      %p146 = scmp.eq.s32.totalorder %s21, 0
      %p147 = por %p145, %p146
      %p148 = scmp.ne.s32.totalorder %s136, %s137
      %p149 = scmp.eq.s32.totalorder %s22, 1
      %p150 = por %p148, %p149
      %p152 = scmp.ne.s32.totalorder %s137, %s151
      %p153 = scmp.eq.s32.totalorder %s22, 0
      %p154 = por %p152, %p153
      %s155 = ssub.s32 %s16, %s23
      %p156 = scmp.eq.s32.totalorder %s155, 0
      %s158 = sadd.s32 %s157, 1
      %s159 = scalar_select %p156, %s157, %s158
      %p162 = pneg %p156
      %p163 = scmp.eq.s32.totalorder %s16, 1
      %p164 = por %p162, %p163
      %p165 = scmp.ne.s32.totalorder %s157, %s160
      %p166 = scmp.eq.s32.totalorder %s16, 0
      %p167 = por %p165, %p166
      %p168 = scmp.ne.s32.totalorder %s157, %s160
      %p169 = scmp.eq.s32.totalorder %s21, 1
      %p170 = por %p168, %p169
      %p171 = scmp.ne.s32.totalorder %s160, %s161
      %p172 = scmp.eq.s32.totalorder %s21, 0
      %p173 = por %p171, %p172
      %p174 = scmp.ne.s32.totalorder %s160, %s161
      %p175 = scmp.eq.s32.totalorder %s22, 1
      %p176 = por %p174, %p175
      %p178 = scmp.ne.s32.totalorder %s161, %s177
      %p179 = scmp.eq.s32.totalorder %s22, 0
      %p180 = por %p178, %p179
      %p181 = scmp.le.s32.totalorder 1, %s16
      %p182 = scmp.lt.s32.totalorder %s16, 3
      %p183 = pnand %p181, %p182
      %p184 = pneg %p183
      // Predicated region
      $region9: #{tpu_custom_call.1} parent=5 // pred_check
        _
      $region10: #{tpu_custom_call.1} parent=5 // pred_check_branch
        %186 = sbr.rel (%p183) target = $region12
      $region11: #{tpu_custom_call.1} parent=5 // pred_region
        %s187 = ssub.s32 %s16, 1
        // Predicated region
        $region13: #{tpu_custom_call.1} parent=11 // pred_check
          %p188 = pneg %p63
        $region14: #{tpu_custom_call.1} parent=11 // pred_check_branch
          %190 = sbr.rel (%p188) target = $region16
        $region15: #{tpu_custom_call.1} parent=11 // pred_region
          %192 = vsyncadd [#allocation6], 0
          %s194 = sshll.u32 %s1, 4
          %s195 = int_to_ptr.hbm [resolvable:$true] %s194
          %s196 = sshll.u32 [#allocation5], 4
          %s197 = int_to_ptr.vmem [resolvable:$true] %s196
          %199 = dma.hbm_to_vmem [thread:$0]  %s195, 48, %s197, [#allocation6]
        $region16: #{tpu_custom_call.1} parent=11 // pred_fallthru
          _
        // Predicated region
        $region17: #{tpu_custom_call.1} parent=11 // pred_check
          %p200 = pneg %p84
        $region18: #{tpu_custom_call.1} parent=11 // pred_check_branch
          %202 = sbr.rel (%p200) target = $region20
        $region19: #{tpu_custom_call.1} parent=11 // pred_region
          %204 = vsyncadd [#allocation6], 0
          %s206 = sshll.u32 %s2, 4
          %s207 = int_to_ptr.hbm [resolvable:$true] %s206
          %s208 = sshll.u32 [#allocation7], 4
          %s209 = int_to_ptr.vmem [resolvable:$true] %s208
          %211 = dma.hbm_to_vmem [thread:$0]  %s207, 64, %s209, [#allocation6]
        $region20: #{tpu_custom_call.1} parent=11 // pred_fallthru
          _
        // Predicated region
        $region21: #{tpu_custom_call.1} parent=11 // pred_check
          %p212 = pneg %p105
        $region22: #{tpu_custom_call.1} parent=11 // pred_check_branch
          %214 = sbr.rel (%p212) target = $region24
        $region23: #{tpu_custom_call.1} parent=11 // pred_region
          _
        $region24: #{tpu_custom_call.1} parent=11 // pred_fallthru
          _
        // Predicated region
        $region25: #{tpu_custom_call.1} parent=11 // pred_check
          %p215 = pneg %p126
        $region26: #{tpu_custom_call.1} parent=11 // pred_check_branch
          %217 = sbr.rel (%p215) target = $region28
        $region27: #{tpu_custom_call.1} parent=11 // pred_region
          _
        $region28: #{tpu_custom_call.1} parent=11 // pred_fallthru
          _
        // Predicated region
        $region29: #{tpu_custom_call.1} parent=11 // pred_check
          %p218 = pneg %p147
        $region30: #{tpu_custom_call.1} parent=11 // pred_check_branch
          %220 = sbr.rel (%p218) target = $region32
        $region31: #{tpu_custom_call.1} parent=11 // pred_region
          _
        $region32: #{tpu_custom_call.1} parent=11 // pred_fallthru
          _
      $region12: #{tpu_custom_call.1} parent=5 // pred_fallthru
        _
      %p221 = scmp.lt.s32.totalorder %s16, 2
      // Predicated region
      $region33: #{tpu_custom_call.1} parent=5 // pred_check
        %p222 = pneg %p221
      $region34: #{tpu_custom_call.1} parent=5 // pred_check_branch
        %224 = sbr.rel (%p222) target = $region36
      $region35: #{tpu_custom_call.1} parent=5 // pred_region
        // Predicated region
        $region37: #{tpu_custom_call.1} parent=35 // pred_check
          %p225 = pneg %p36
        $region38: #{tpu_custom_call.1} parent=35 // pred_check_branch
          %227 = sbr.rel (%p225) target = $region40
        $region39: #{tpu_custom_call.1} parent=35 // pred_region
          %s228 = sand.u32 %s26, 1
          %s229 = scalar_lea.sflag [#allocation4], %s228
          %s230 = sand.u32 %s26, 1
          %s231 = smul.addr %s230, 16
          %s232 = scalar_lea.vmem [#allocation3], %s231
          %234 = vsyncadd %s229, 0
          %s235 = smul.addr %s16, 4
          %s236 = smul.addr %s235, 4
          %s237 = scalar_lea.hbm %s0, %s236
          %s239 = sshll.u32 %s237, 4
          %s240 = int_to_ptr.hbm [resolvable:$true] %s239
          %s241 = sshll.u32 %s232, 4
          %s242 = int_to_ptr.vmem [resolvable:$true] %s241
          %244 = dma.hbm_to_vmem [thread:$0]  %s240, 256, %s242, %s229
        $region40: #{tpu_custom_call.1} parent=35 // pred_fallthru
          _
      $region36: #{tpu_custom_call.1} parent=5 // pred_fallthru
        _
      %p245 = scmp.le.s32.totalorder 1, %s16
      %p246 = scmp.lt.s32.totalorder %s16, 3
      %p247 = pnand %p245, %p246
      %p248 = pneg %p247
      // Predicated region
      $region41: #{tpu_custom_call.1} parent=5 // pred_check
        _
      $region42: #{tpu_custom_call.1} parent=5 // pred_check_branch
        %250 = sbr.rel (%p247) target = $region44
      $region43: #{tpu_custom_call.1} parent=5 // pred_region
        %s251 = ssub.s32 %s16, 1
        %s252 = sand.u32 %s29, 1
        %s253 = scalar_lea.sflag [#allocation4], %s252
        %s254 = sand.u32 %s29, 1
        %s255 = smul.addr %s254, 16
        %s256 = scalar_lea.vmem [#allocation3], %s255
        // Predicated region
        $region45: #{tpu_custom_call.1} parent=43 // pred_check
          %p257 = pneg %p42
        $region46: #{tpu_custom_call.1} parent=43 // pred_check_branch
          %259 = sbr.rel (%p257) target = $region48
        $region47: #{tpu_custom_call.1} parent=43 // pred_region
          %261 = dma.done %s253, 256
        $region48: #{tpu_custom_call.1} parent=43 // pred_fallthru
          _
        // Predicated region
        $region49: #{tpu_custom_call.1} parent=43 // pred_check
          %p262 = pneg %p63
        $region50: #{tpu_custom_call.1} parent=43 // pred_check_branch
          %264 = sbr.rel (%p262) target = $region52
        $region51: #{tpu_custom_call.1} parent=43 // pred_region
          %266 = dma.done [#allocation6], 48
        $region52: #{tpu_custom_call.1} parent=43 // pred_fallthru
          _
        // Predicated region
        $region53: #{tpu_custom_call.1} parent=43 // pred_check
          %p267 = pneg %p84
        $region54: #{tpu_custom_call.1} parent=43 // pred_check_branch
          %269 = sbr.rel (%p267) target = $region56
        $region55: #{tpu_custom_call.1} parent=43 // pred_region
          %271 = dma.done [#allocation6], 64
        $region56: #{tpu_custom_call.1} parent=43 // pred_fallthru
          _
        %s272 = sand.u32 %s29, 1
        %s273 = scalar_lea.sflag [#allocation4], %s272
        %s274 = sand.u32 %s29, 1
        %s275 = smul.addr %s274, 16
        %s276 = scalar_lea.vmem [#allocation3], %s275
        %p277 = pneg %p42
        %p278 = pneg %p39
        %p279 = pneg %p63
        %p280 = pneg %p60
        %p281 = pneg %p84
        %p282 = pneg %p81
        %p283 = pneg %p105
        %p284 = pneg %p102
        %p285 = pneg %p126
        %p286 = pneg %p123
        %p287 = pneg %p147
        %p288 = pneg %p144
        %p289 = pneg %p173
        %p290 = pneg %p170
        %p291 = scmp.lt.s32.totalorder %s21, 1
        %s292 = scalar_select %p291, %s21, 1
        %s293 = smul.addr %s292, 8
        %s294 = smul.addr %s293, 8
        %s295 = scalar_lea.vmem %s6, %s294
        %p296 = scmp.lt.s32.totalorder %s21, 1
        %s297 = scalar_select %p296, %s21, 1
        %s298 = smul.addr %s297, 8
        %s299 = smul.addr %s298, 8
        %s300 = scalar_lea.vmem %s6, %s299
        %301 = vst [vmem:[%s300] sm:$0xff] 0.0
        %302 = vst [vmem:[%s300 + $0x8] sm:$0xff] 0.0
        %303 = vst [vmem:[%s300 + $0x10] sm:$0xff] 0.0
        %vm304 = vcmask 1014784
        %305 = vst.msk [vmem:[%s300 + $0x18] sm:$0xff] %vm304, 0.0
        %306 = vst [vmem:[%s300 + $0x20] sm:$0xf] 0.0
        %307 = vst [vmem:[%s300 + $0x28] sm:$0xf] 0.0
        %308 = vst [vmem:[%s300 + $0x30] sm:$0xf] 0.0
        %vm309 = vcmask 1010688
        %310 = vst.msk [vmem:[%s300 + $0x38] sm:$0xf] %vm309, 0.0
        %311 = vst [vmem:[#allocation2] sm:$0xff] 0.0
        %312 = vst [vmem:[#allocation2 + $0x8] sm:$0xff] 0.0
        %vm313 = vcmask 523264
        %314 = vst.msk [vmem:[#allocation2 + $0x10] sm:$0xff] %vm313, 0.0
        %315 = vst [vmem:[#allocation2 + $0x18] sm:$0xff] 0.0
        %316 = vst [vmem:[#allocation2 + $0x20] sm:$0xff] 0.0
        %317 = vst.msk [vmem:[#allocation2 + $0x28] sm:$0xff] %vm313, 0.0
        %318 = vst [vmem:[#allocation2 + $0x30] sm:$0xff] 0.0
        %319 = vst [vmem:[#allocation2 + $0x38] sm:$0xff] 0.0
        %320 = vst.msk [vmem:[#allocation2 + $0x40] sm:$0xff] %vm313, 0.0
        %321 = vst [vmem:[#allocation2 + $0x48] sm:$0xff] 0.0
        %322 = vst [vmem:[#allocation2 + $0x50] sm:$0xff] 0.0
        %323 = vst.msk [vmem:[#allocation2 + $0x58] sm:$0xff] %vm313, 0.0
        %324 = vst [vmem:[#allocation2 + $0x60] sm:$0xff] 0.0
        %325 = vst [vmem:[#allocation2 + $0x68] sm:$0xff] 0.0
        %326 = vst.msk [vmem:[#allocation2 + $0x70] sm:$0xff] %vm313, 0.0
        %327 = vst [vmem:[#allocation2 + $0x78] sm:$0xff] 0.0
        %328 = vst [vmem:[#allocation2 + $0x80] sm:$0xff] 0.0
        %329 = vst.msk [vmem:[#allocation2 + $0x88] sm:$0xff] %vm313, 0.0
        %330 = vst [vmem:[#allocation2 + $0x90] sm:$0xff] 0.0
        %331 = vst [vmem:[#allocation2 + $0x98] sm:$0xff] 0.0
        %332 = vst.msk [vmem:[#allocation2 + $0xa0] sm:$0xff] %vm313, 0.0
        %333 = vst [vmem:[#allocation2 + $0xa8] sm:$0xff] 0.0
        %334 = vst [vmem:[#allocation2 + $0xb0] sm:$0xff] 0.0
        %335 = vst.msk [vmem:[#allocation2 + $0xb8] sm:$0xff] %vm313, 0.0
        %336 = vst [vmem:[#allocation2 + $0xc0] sm:$0xff] 0.0
        %337 = vst [vmem:[#allocation2 + $0xc8] sm:$0xff] 0.0
        %338 = vst.msk [vmem:[#allocation2 + $0xd0] sm:$0xff] %vm313, 0.0
        %339 = vst [vmem:[#allocation2 + $0xd8] sm:$0xff] 0.0
        %340 = vst [vmem:[#allocation2 + $0xe0] sm:$0xff] 0.0
        %341 = vst.msk [vmem:[#allocation2 + $0xe8] sm:$0xff] %vm313, 0.0
        %342 = vst [vmem:[#allocation2 + $0xf0] sm:$0xff] 0.0
        %343 = vst [vmem:[#allocation2 + $0xf8] sm:$0xff] 0.0
        %344 = vst.msk [vmem:[#allocation2 + $0x100] sm:$0xff] %vm313, 0.0
        %345 = vst [vmem:[#allocation2 + $0x108] sm:$0xff] 0.0
        %346 = vst [vmem:[#allocation2 + $0x110] sm:$0xff] 0.0
        %347 = vst.msk [vmem:[#allocation2 + $0x118] sm:$0xff] %vm313, 0.0
        %348 = vst [vmem:[#allocation2 + $0x120] sm:$0xff] 0.0
        %349 = vst [vmem:[#allocation2 + $0x128] sm:$0xff] 0.0
        %350 = vst.msk [vmem:[#allocation2 + $0x130] sm:$0xff] %vm313, 0.0
        %351 = vst [vmem:[#allocation2 + $0x138] sm:$0xff] 0.0
        %352 = vst [vmem:[#allocation2 + $0x140] sm:$0xff] 0.0
        %353 = vst.msk [vmem:[#allocation2 + $0x148] sm:$0xff] %vm313, 0.0
        %354 = vst [vmem:[#allocation2 + $0x150] sm:$0xff] 0.0
        %355 = vst [vmem:[#allocation2 + $0x158] sm:$0xff] 0.0
        %356 = vst.msk [vmem:[#allocation2 + $0x160] sm:$0xff] %vm313, 0.0
        %357 = vst [vmem:[#allocation2 + $0x168] sm:$0xff] 0.0
        %358 = vst [vmem:[#allocation2 + $0x170] sm:$0xff] 0.0
        %359 = vst.msk [vmem:[#allocation2 + $0x178] sm:$0xff] %vm313, 0.0
        %360 = vst [vmem:[#allocation2 + $0x180] sm:$0xff] 0.0
        %361 = vst [vmem:[#allocation2 + $0x188] sm:$0xff] 0.0
        %362 = vst.msk [vmem:[#allocation2 + $0x190] sm:$0xff] %vm313, 0.0
        %363 = vst [vmem:[#allocation2 + $0x198] sm:$0xff] 0.0
        %364 = vst [vmem:[#allocation2 + $0x1a0] sm:$0xff] 0.0
        %365 = vst.msk [vmem:[#allocation2 + $0x1a8] sm:$0xff] %vm313, 0.0
        %v366 = vld [vmem:[#allocation5] sm:$0x7]
        %v367 = vld [vmem:[%s256] sm:$0xff]
        %v368 = vld [vmem:[%s256 + $0x8] sm:$0xff]
        %371 = vst [vmem:[#allocation1] ss:$2 sm:$0xff] %v367
        %s372 = scalar_lea.vmem [#allocation1], 16
        %373 = vst [vmem:[%s372] ss:$2 sm:$0xff] %v368
        %v374 = vld.sshfl [vmem:[#allocation1] sm:$0xff pattern:$0x75316420]
        %v375 = vld.sshfl [vmem:[#allocation1 + $0x8] sm:$0xff pattern:$0x75316420]
        %v376 = vld.sshfl [vmem:[#allocation1 + $0x10] sm:$0xff pattern:$0x75316420]
        %v377 = vld.sshfl [vmem:[#allocation1 + $0x18] sm:$0xff pattern:$0x75316420]
        %382 = vst [vmem:[%s300] sm:$0xf] %v374
        %383 = vst [vmem:[%s300 + $0x8] sm:$0xf] %v375
        %384 = vst [vmem:[%s300 + $0x10] sm:$0xf] %v376
        %385 = vst.msk [vmem:[%s300 + $0x18] sm:$0xf] %vm309, %v377
        %v386 = vld [vmem:[#allocation7] sm:$0xf]
        %v387 = vld [vmem:[%s3] sm:$0xf]
        %v388 = vld [vmem:[%s300] sm:$0xf]
        %v389 = vld [vmem:[%s300 + $0x8] sm:$0xf]
        %v390 = vld [vmem:[%s300 + $0x10] sm:$0xf]
        %v391 = vld [vmem:[%s300 + $0x18] sm:$0xf]
        %396 = vrot.lane.b32.xlu0 %v388, 21
        %v397 = vpop.permute.xlu0 %396
        %398 = vrot.lane.b32.xlu0 %v389, 21
        %v399 = vpop.permute.xlu0 %398
        %400 = vrot.lane.b32.xlu0 %v390, 21
        %v401 = vpop.permute.xlu0 %400
        %402 = vrot.lane.b32.xlu0 %v391, 21
        %v403 = vpop.permute.xlu0 %402
        %vm404 = vcmask 171008
        %v405 = vsel %vm404, %v397, %v399
        %v406 = vsel %vm404, %v399, %v401
        %v407 = vsel %vm404, %v401, %v403
        %411 = vst [vmem:[#allocation2] sm:$0xf] %v405
        %412 = vst [vmem:[#allocation2 + $0x8] sm:$0xf] %v406
        %vm413 = vcmask 519168
        %414 = vst.msk [vmem:[#allocation2 + $0x10] sm:$0xf] %vm413, %v407
        %v415 = vld [vmem:[%s300] sm:$0xf]
        %v416 = vld [vmem:[%s300 + $0x8] sm:$0xf]
        %v417 = vld [vmem:[%s300 + $0x10] sm:$0xf]
        %v418 = vld [vmem:[%s300 + $0x18] sm:$0xf]
        %423 = vrot.lane.b32.xlu0 %v415, 20
        %v424 = vpop.permute.xlu0 %423
        %425 = vrot.lane.b32.xlu0 %v416, 20
        %v426 = vpop.permute.xlu0 %425
        %427 = vrot.lane.b32.xlu0 %v417, 20
        %v428 = vpop.permute.xlu0 %427
        %429 = vrot.lane.b32.xlu0 %v418, 20
        %v430 = vpop.permute.xlu0 %429
        %vm431 = vcmask 162816
        %v432 = vsel %vm431, %v424, %v426
        %v433 = vsel %vm431, %v426, %v428
        %v434 = vsel %vm431, %v428, %v430
        %438 = vst [vmem:[#allocation2 + $0x18] sm:$0xf] %v432
        %439 = vst [vmem:[#allocation2 + $0x20] sm:$0xf] %v433
        %440 = vst.msk [vmem:[#allocation2 + $0x28] sm:$0xf] %vm413, %v434
        %v441 = vld [vmem:[%s300] sm:$0xf]
        %v442 = vld [vmem:[%s300 + $0x8] sm:$0xf]
        %v443 = vld [vmem:[%s300 + $0x10] sm:$0xf]
        %v444 = vld [vmem:[%s300 + $0x18] sm:$0xf]
        %449 = vrot.lane.b32.xlu0 %v441, 19
        %v450 = vpop.permute.xlu0 %449
        %451 = vrot.lane.b32.xlu0 %v442, 19
        %v452 = vpop.permute.xlu0 %451
        %453 = vrot.lane.b32.xlu0 %v443, 19
        %v454 = vpop.permute.xlu0 %453
        %455 = vrot.lane.b32.xlu0 %v444, 19
        %v456 = vpop.permute.xlu0 %455
        %vm457 = vcmask 154624
        %v458 = vsel %vm457, %v450, %v452
        %v459 = vsel %vm457, %v452, %v454
        %v460 = vsel %vm457, %v454, %v456
        %464 = vst [vmem:[#allocation2 + $0x30] sm:$0xf] %v458
        %465 = vst [vmem:[#allocation2 + $0x38] sm:$0xf] %v459
        %466 = vst.msk [vmem:[#allocation2 + $0x40] sm:$0xf] %vm413, %v460
        %v467 = vld [vmem:[%s300] sm:$0xf]
        %v468 = vld [vmem:[%s300 + $0x8] sm:$0xf]
        %v469 = vld [vmem:[%s300 + $0x10] sm:$0xf]
        %v470 = vld [vmem:[%s300 + $0x18] sm:$0xf]
        %475 = vrot.lane.b32.xlu0 %v467, 1
        %v476 = vpop.permute.xlu0 %475
        %477 = vrot.lane.b32.xlu0 %v468, 1
        %v478 = vpop.permute.xlu0 %477
        %479 = vrot.lane.b32.xlu0 %v469, 1
        %v480 = vpop.permute.xlu0 %479
        %481 = vrot.lane.b32.xlu0 %v470, 1
        %v482 = vpop.permute.xlu0 %481
        %vm483 = vcmask 7168
        %v484 = vsel %vm483, %v476, %v478
        %v485 = vsel %vm483, %v478, %v480
        %v486 = vsel %vm483, %v480, %v482
        %490 = vst [vmem:[#allocation2 + $0x48] sm:$0xf] %v484
        %491 = vst [vmem:[#allocation2 + $0x50] sm:$0xf] %v485
        %492 = vst.msk [vmem:[#allocation2 + $0x58] sm:$0xf] %vm413, %v486
        %v493 = vld [vmem:[%s300 + $0x8] sm:$0xf]
        %v494 = vld [vmem:[%s300 + $0x10] sm:$0xf]
        %v495 = vld [vmem:[%s300 + $0x18] sm:$0xf]
        %496 = vst [vmem:[#allocation2 + $0x60] sm:$0xf] %v493
        %497 = vst [vmem:[#allocation2 + $0x68] sm:$0xf] %v494
        %498 = vst.msk [vmem:[#allocation2 + $0x70] sm:$0xf] %vm413, %v495
        %v499 = vld [vmem:[%s300 + $0x8] sm:$0xf]
        %v500 = vld [vmem:[%s300 + $0x10] sm:$0xf]
        %v501 = vld [vmem:[%s300 + $0x18] sm:$0xf]
        %505 = vrot.lane.b32.xlu0 %v499, 127
        %v506 = vpop.permute.xlu0 %505
        %507 = vrot.lane.b32.xlu0 %v500, 127
        %v508 = vpop.permute.xlu0 %507
        %509 = vrot.lane.b32.xlu0 %v501, 127
        %v510 = vpop.permute.xlu0 %509
        %vm511 = vcmask 1039360
        %v512 = vsel %vm511, %v506, %v508
        %v513 = vsel %vm511, %v508, %v510
        %517 = vst [vmem:[#allocation2 + $0x78] sm:$0xf] %v512
        %518 = vst [vmem:[#allocation2 + $0x80] sm:$0xf] %v513
        %519 = vst.msk [vmem:[#allocation2 + $0x88] sm:$0xf] %vm413, %v510
        %v520 = vld [vmem:[%s300 + $0x8] sm:$0xf]
        %v521 = vld [vmem:[%s300 + $0x10] sm:$0xf]
        %v522 = vld [vmem:[%s300 + $0x18] sm:$0xf]
        %526 = vrot.lane.b32.xlu0 %v520, 109
        %v527 = vpop.permute.xlu0 %526
        %528 = vrot.lane.b32.xlu0 %v521, 109
        %v529 = vpop.permute.xlu0 %528
        %530 = vrot.lane.b32.xlu0 %v522, 109
        %v531 = vpop.permute.xlu0 %530
        %vm532 = vcmask 891904
        %v533 = vsel %vm532, %v527, %v529
        %v534 = vsel %vm532, %v529, %v531
        %538 = vst [vmem:[#allocation2 + $0x90] sm:$0xf] %v533
        %539 = vst [vmem:[#allocation2 + $0x98] sm:$0xf] %v534
        %540 = vst.msk [vmem:[#allocation2 + $0xa0] sm:$0xf] %vm413, %v531
        %v541 = vld [vmem:[%s300 + $0x8] sm:$0xf]
        %v542 = vld [vmem:[%s300 + $0x10] sm:$0xf]
        %v543 = vld [vmem:[%s300 + $0x18] sm:$0xf]
        %547 = vrot.lane.b32.xlu0 %v541, 108
        %v548 = vpop.permute.xlu0 %547
        %549 = vrot.lane.b32.xlu0 %v542, 108
        %v550 = vpop.permute.xlu0 %549
        %551 = vrot.lane.b32.xlu0 %v543, 108
        %v552 = vpop.permute.xlu0 %551
        %vm553 = vcmask 883712
        %v554 = vsel %vm553, %v548, %v550
        %v555 = vsel %vm553, %v550, %v552
        %559 = vst [vmem:[#allocation2 + $0xa8] sm:$0xf] %v554
        %560 = vst [vmem:[#allocation2 + $0xb0] sm:$0xf] %v555
        %561 = vst.msk [vmem:[#allocation2 + $0xb8] sm:$0xf] %vm413, %v552
        %v562 = vld [vmem:[%s300 + $0x8] sm:$0xf]
        %v563 = vld [vmem:[%s300 + $0x10] sm:$0xf]
        %v564 = vld [vmem:[%s300 + $0x18] sm:$0xf]
        %568 = vrot.lane.b32.xlu0 %v562, 107
        %v569 = vpop.permute.xlu0 %568
        %570 = vrot.lane.b32.xlu0 %v563, 107
        %v571 = vpop.permute.xlu0 %570
        %572 = vrot.lane.b32.xlu0 %v564, 107
        %v573 = vpop.permute.xlu0 %572
        %vm574 = vcmask 875520
        %v575 = vsel %vm574, %v569, %v571
        %v576 = vsel %vm574, %v571, %v573
        %580 = vst [vmem:[#allocation2 + $0xc0] sm:$0xf] %v575
        %581 = vst [vmem:[#allocation2 + $0xc8] sm:$0xf] %v576
        %582 = vst.msk [vmem:[#allocation2 + $0xd0] sm:$0xf] %vm413, %v573
        %v583 = vld [vmem:[#allocation2] sm:$0xff]
        %v584 = vld [vmem:[#allocation2 + $0x8] sm:$0xff]
        %v585 = vld [vmem:[#allocation2 + $0x10] sm:$0xff]
        %v586 = vld [vmem:[#allocation2 + $0x18] sm:$0xff]
        %v587 = vld [vmem:[#allocation2 + $0x20] sm:$0xff]
        %v588 = vld [vmem:[#allocation2 + $0x28] sm:$0xff]
        %v589 = vld [vmem:[#allocation2 + $0x30] sm:$0xff]
        %v590 = vld [vmem:[#allocation2 + $0x38] sm:$0xff]
        %v591 = vld [vmem:[#allocation2 + $0x40] sm:$0xff]
        %v592 = vld [vmem:[#allocation2 + $0x48] sm:$0xff]
        %v593 = vld [vmem:[#allocation2 + $0x50] sm:$0xff]
        %v594 = vld [vmem:[#allocation2 + $0x58] sm:$0xff]
        %v595 = vld [vmem:[#allocation2 + $0x60] sm:$0xff]
        %v596 = vld [vmem:[#allocation2 + $0x68] sm:$0xff]
        %v597 = vld [vmem:[#allocation2 + $0x70] sm:$0xff]
        %v598 = vld [vmem:[#allocation2 + $0x78] sm:$0xff]
        %v599 = vld [vmem:[#allocation2 + $0x80] sm:$0xff]
        %v600 = vld [vmem:[#allocation2 + $0x88] sm:$0xff]
        %v601 = vld [vmem:[#allocation2 + $0x90] sm:$0xff]
        %v602 = vld [vmem:[#allocation2 + $0x98] sm:$0xff]
        %v603 = vld [vmem:[#allocation2 + $0xa0] sm:$0xff]
        %v604 = vld [vmem:[#allocation2 + $0xa8] sm:$0xff]
        %v605 = vld [vmem:[#allocation2 + $0xb0] sm:$0xff]
        %v606 = vld [vmem:[#allocation2 + $0xb8] sm:$0xff]
        %v607 = vld [vmem:[#allocation2 + $0xc0] sm:$0xff]
        %v608 = vld [vmem:[#allocation2 + $0xc8] sm:$0xff]
        %v609 = vld [vmem:[#allocation2 + $0xd0] sm:$0xff]
        %611 = vset.pattern.permute.xlu0 0
        %612 = vperm.xlu0 %611, %v387
        %v613 = vpop.permute.xlu0 %612
        %vm615 = vcmask 588800
        %v617 = vsel %vm615, %v386, 0
        %619 = vmatpush.msra.mxu0 0.0
        %620 = vmatpush.msra.mxu0 0.0
        %621 = vmatpush.msra.mxu0 0.0
        %622 = vmatpush.msra.mxu0 0.0
        %623 = vmatpush.msra.mxu0 0.0
        %624 = vmatpush.msra.mxu0 0.0
        %625 = vmatpush.msra.mxu0 0.0
        %626 = vmatpush.msra.mxu0 %v607
        %627 = vmatpush.msra.mxu0 %v604
        %628 = vmatpush.msra.mxu0 %v601
        %629 = vmatpush.msra.mxu0 %v598
        %630 = vmatpush.msra.mxu0 %v595
        %631 = vmatpush.msra.mxu0 %v592
        %632 = vmatpush.msra.mxu0 %v589
        %633 = vmatpush.msra.mxu0 %v586
        %634 = vmatpush.msra.mxu0 %v583
        %635 = vmatmul.f32.gmra.mxu0 %v617
        %v636 = vpop.f32.mrf.mxu0
        %v637 = vadd.f32 %v613, %v636
        %638 = vdwg.mxu0
        %639 = vmatpush.msra.mxu0 0.0
        %640 = vmatpush.msra.mxu0 0.0
        %641 = vmatpush.msra.mxu0 0.0
        %642 = vmatpush.msra.mxu0 0.0
        %643 = vmatpush.msra.mxu0 0.0
        %644 = vmatpush.msra.mxu0 0.0
        %645 = vmatpush.msra.mxu0 0.0
        %646 = vmatpush.msra.mxu0 %v608
        %647 = vmatpush.msra.mxu0 %v605
        %648 = vmatpush.msra.mxu0 %v602
        %649 = vmatpush.msra.mxu0 %v599
        %650 = vmatpush.msra.mxu0 %v596
        %651 = vmatpush.msra.mxu0 %v593
        %652 = vmatpush.msra.mxu0 %v590
        %653 = vmatpush.msra.mxu0 %v587
        %654 = vmatpush.msra.mxu0 %v584
        %655 = vmatmul.f32.gmra.mxu0 %v617
        %v656 = vpop.f32.mrf.mxu0
        %v657 = vadd.f32 %v613, %v656
        %658 = vdwg.mxu0
        %659 = vmatpush.msra.mxu0 0.0
        %660 = vmatpush.msra.mxu0 0.0
        %661 = vmatpush.msra.mxu0 0.0
        %662 = vmatpush.msra.mxu0 0.0
        %663 = vmatpush.msra.mxu0 0.0
        %664 = vmatpush.msra.mxu0 0.0
        %665 = vmatpush.msra.mxu0 0.0
        %666 = vmatpush.msra.mxu0 %v609
        %667 = vmatpush.msra.mxu0 %v606
        %668 = vmatpush.msra.mxu0 %v603
        %669 = vmatpush.msra.mxu0 %v600
        %670 = vmatpush.msra.mxu0 %v597
        %671 = vmatpush.msra.mxu0 %v594
        %672 = vmatpush.msra.mxu0 %v591
        %673 = vmatpush.msra.mxu0 %v588
        %674 = vmatpush.msra.mxu0 %v585
        %675 = vmatmul.f32.gmra.mxu0 %v617
        %v676 = vpop.f32.mrf.mxu0
        %v677 = vadd.f32 %v613, %v676
        %678 = vdwg.mxu0
        %v680 = vperm.slane %v366, 0
        %v681 = vperm.slane %v366, 1
        %v682 = vperm.slane %v366, 2
        %v686 = vmul.f32 %v637, %v680
        %v687 = vmul.f32 %v657, %v681
        %v688 = vmul.f32 %v677, %v682
        %v692 = vrot.slane %v686, 4
        %v693 = vrot.slane %v687, 4
        %v694 = vrot.slane %v688, 4
        %698 = vst [vmem:[%s300 + $0x8] sm:$0xf0] %v692
        %699 = vst [vmem:[%s300 + $0x10] sm:$0xf0] %v693
        %vm700 = vcmask 523268
        %701 = vst.msk [vmem:[%s300 + $0x18] sm:$0xf0] %vm700, %v694
        %v702 = vld [vmem:[%s4] sm:$0xff]
        %v703 = vld [vmem:[%s5] sm:$0xf]
        %v704 = vld [vmem:[%s300] sm:$0xff]
        %v705 = vld [vmem:[%s300 + $0x8] sm:$0xff]
        %v706 = vld [vmem:[%s300 + $0x10] sm:$0xff]
        %v707 = vld [vmem:[%s300 + $0x18] sm:$0xff]
        %712 = vrot.lane.b32.xlu0 %v704, 21
        %v713 = vpop.permute.xlu0 %712
        %714 = vrot.lane.b32.xlu0 %v705, 21
        %v715 = vpop.permute.xlu0 %714
        %716 = vrot.lane.b32.xlu0 %v706, 21
        %v717 = vpop.permute.xlu0 %716
        %718 = vrot.lane.b32.xlu0 %v707, 21
        %v719 = vpop.permute.xlu0 %718
        %v720 = vsel %vm404, %v713, %v715
        %v721 = vsel %vm404, %v715, %v717
        %v722 = vsel %vm404, %v717, %v719
        %726 = vst [vmem:[#allocation2] sm:$0xff] %v720
        %727 = vst [vmem:[#allocation2 + $0x8] sm:$0xff] %v721
        %728 = vst.msk [vmem:[#allocation2 + $0x10] sm:$0xff] %vm313, %v722
        %v729 = vld [vmem:[%s300] sm:$0xff]
        %v730 = vld [vmem:[%s300 + $0x8] sm:$0xff]
        %v731 = vld [vmem:[%s300 + $0x10] sm:$0xff]
        %v732 = vld [vmem:[%s300 + $0x18] sm:$0xff]
        %737 = vrot.lane.b32.xlu0 %v729, 20
        %v738 = vpop.permute.xlu0 %737
        %739 = vrot.lane.b32.xlu0 %v730, 20
        %v740 = vpop.permute.xlu0 %739
        %741 = vrot.lane.b32.xlu0 %v731, 20
        %v742 = vpop.permute.xlu0 %741
        %743 = vrot.lane.b32.xlu0 %v732, 20
        %v744 = vpop.permute.xlu0 %743
        %v745 = vsel %vm431, %v738, %v740
        %v746 = vsel %vm431, %v740, %v742
        %v747 = vsel %vm431, %v742, %v744
        %751 = vst [vmem:[#allocation2 + $0x18] sm:$0xff] %v745
        %752 = vst [vmem:[#allocation2 + $0x20] sm:$0xff] %v746
        %753 = vst.msk [vmem:[#allocation2 + $0x28] sm:$0xff] %vm313, %v747
        %v754 = vld [vmem:[%s300] sm:$0xff]
        %v755 = vld [vmem:[%s300 + $0x8] sm:$0xff]
        %v756 = vld [vmem:[%s300 + $0x10] sm:$0xff]
        %v757 = vld [vmem:[%s300 + $0x18] sm:$0xff]
        %762 = vrot.lane.b32.xlu0 %v754, 19
        %v763 = vpop.permute.xlu0 %762
        %764 = vrot.lane.b32.xlu0 %v755, 19
        %v765 = vpop.permute.xlu0 %764
        %766 = vrot.lane.b32.xlu0 %v756, 19
        %v767 = vpop.permute.xlu0 %766
        %768 = vrot.lane.b32.xlu0 %v757, 19
        %v769 = vpop.permute.xlu0 %768
        %v770 = vsel %vm457, %v763, %v765
        %v771 = vsel %vm457, %v765, %v767
        %v772 = vsel %vm457, %v767, %v769
        %776 = vst [vmem:[#allocation2 + $0x30] sm:$0xff] %v770
        %777 = vst [vmem:[#allocation2 + $0x38] sm:$0xff] %v771
        %778 = vst.msk [vmem:[#allocation2 + $0x40] sm:$0xff] %vm313, %v772
        %v779 = vld [vmem:[%s300] sm:$0xff]
        %v780 = vld [vmem:[%s300 + $0x8] sm:$0xff]
        %v781 = vld [vmem:[%s300 + $0x10] sm:$0xff]
        %v782 = vld [vmem:[%s300 + $0x18] sm:$0xff]
        %787 = vrot.lane.b32.xlu0 %v779, 1
        %v788 = vpop.permute.xlu0 %787
        %789 = vrot.lane.b32.xlu0 %v780, 1
        %v790 = vpop.permute.xlu0 %789
        %791 = vrot.lane.b32.xlu0 %v781, 1
        %v792 = vpop.permute.xlu0 %791
        %793 = vrot.lane.b32.xlu0 %v782, 1
        %v794 = vpop.permute.xlu0 %793
        %v795 = vsel %vm483, %v788, %v790
        %v796 = vsel %vm483, %v790, %v792
        %v797 = vsel %vm483, %v792, %v794
        %801 = vst [vmem:[#allocation2 + $0x48] sm:$0xff] %v795
        %802 = vst [vmem:[#allocation2 + $0x50] sm:$0xff] %v796
        %803 = vst.msk [vmem:[#allocation2 + $0x58] sm:$0xff] %vm313, %v797
        %v804 = vld [vmem:[%s300 + $0x8] sm:$0xff]
        %v805 = vld [vmem:[%s300 + $0x10] sm:$0xff]
        %v806 = vld [vmem:[%s300 + $0x18] sm:$0xff]
        %807 = vst [vmem:[#allocation2 + $0x60] sm:$0xff] %v804
        %808 = vst [vmem:[#allocation2 + $0x68] sm:$0xff] %v805
        %809 = vst.msk [vmem:[#allocation2 + $0x70] sm:$0xff] %vm313, %v806
        %v810 = vld [vmem:[%s300 + $0x8] sm:$0xff]
        %v811 = vld [vmem:[%s300 + $0x10] sm:$0xff]
        %v812 = vld [vmem:[%s300 + $0x18] sm:$0xff]
        %816 = vrot.lane.b32.xlu0 %v810, 127
        %v817 = vpop.permute.xlu0 %816
        %818 = vrot.lane.b32.xlu0 %v811, 127
        %v819 = vpop.permute.xlu0 %818
        %820 = vrot.lane.b32.xlu0 %v812, 127
        %v821 = vpop.permute.xlu0 %820
        %v822 = vsel %vm511, %v817, %v819
        %v823 = vsel %vm511, %v819, %v821
        %827 = vst [vmem:[#allocation2 + $0x78] sm:$0xff] %v822
        %828 = vst [vmem:[#allocation2 + $0x80] sm:$0xff] %v823
        %829 = vst.msk [vmem:[#allocation2 + $0x88] sm:$0xff] %vm313, %v821
        %v830 = vld [vmem:[%s300 + $0x8] sm:$0xff]
        %v831 = vld [vmem:[%s300 + $0x10] sm:$0xff]
        %v832 = vld [vmem:[%s300 + $0x18] sm:$0xff]
        %836 = vrot.lane.b32.xlu0 %v830, 109
        %v837 = vpop.permute.xlu0 %836
        %838 = vrot.lane.b32.xlu0 %v831, 109
        %v839 = vpop.permute.xlu0 %838
        %840 = vrot.lane.b32.xlu0 %v832, 109
        %v841 = vpop.permute.xlu0 %840
        %v842 = vsel %vm532, %v837, %v839
        %v843 = vsel %vm532, %v839, %v841
        %847 = vst [vmem:[#allocation2 + $0x90] sm:$0xff] %v842
        %848 = vst [vmem:[#allocation2 + $0x98] sm:$0xff] %v843
        %849 = vst.msk [vmem:[#allocation2 + $0xa0] sm:$0xff] %vm313, %v841
        %v850 = vld [vmem:[%s300 + $0x8] sm:$0xff]
        %v851 = vld [vmem:[%s300 + $0x10] sm:$0xff]
        %v852 = vld [vmem:[%s300 + $0x18] sm:$0xff]
        %856 = vrot.lane.b32.xlu0 %v850, 108
        %v857 = vpop.permute.xlu0 %856
        %858 = vrot.lane.b32.xlu0 %v851, 108
        %v859 = vpop.permute.xlu0 %858
        %860 = vrot.lane.b32.xlu0 %v852, 108
        %v861 = vpop.permute.xlu0 %860
        %v862 = vsel %vm553, %v857, %v859
        %v863 = vsel %vm553, %v859, %v861
        %867 = vst [vmem:[#allocation2 + $0xa8] sm:$0xff] %v862
        %868 = vst [vmem:[#allocation2 + $0xb0] sm:$0xff] %v863
        %869 = vst.msk [vmem:[#allocation2 + $0xb8] sm:$0xff] %vm313, %v861
        %v870 = vld [vmem:[%s300 + $0x8] sm:$0xff]
        %v871 = vld [vmem:[%s300 + $0x10] sm:$0xff]
        %v872 = vld [vmem:[%s300 + $0x18] sm:$0xff]
        %876 = vrot.lane.b32.xlu0 %v870, 107
        %v877 = vpop.permute.xlu0 %876
        %878 = vrot.lane.b32.xlu0 %v871, 107
        %v879 = vpop.permute.xlu0 %878
        %880 = vrot.lane.b32.xlu0 %v872, 107
        %v881 = vpop.permute.xlu0 %880
        %v882 = vsel %vm574, %v877, %v879
        %v883 = vsel %vm574, %v879, %v881
        %887 = vst [vmem:[#allocation2 + $0xc0] sm:$0xff] %v882
        %888 = vst [vmem:[#allocation2 + $0xc8] sm:$0xff] %v883
        %889 = vst.msk [vmem:[#allocation2 + $0xd0] sm:$0xff] %vm313, %v881
        %v890 = vld [vmem:[%s300] sm:$0xff]
        %v891 = vld [vmem:[%s300 + $0x8] sm:$0xff]
        %v892 = vld [vmem:[%s300 + $0x10] sm:$0xff]
        %v893 = vld [vmem:[%s300 + $0x18] sm:$0xff]
        %898 = vrot.lane.b32.xlu0 %v890, 42
        %v899 = vpop.permute.xlu0 %898
        %900 = vrot.lane.b32.xlu0 %v891, 42
        %v901 = vpop.permute.xlu0 %900
        %902 = vrot.lane.b32.xlu0 %v892, 42
        %v903 = vpop.permute.xlu0 %902
        %904 = vrot.lane.b32.xlu0 %v893, 42
        %v905 = vpop.permute.xlu0 %904
        %vm906 = vcmask 343040
        %v907 = vsel %vm906, %v899, %v901
        %v908 = vsel %vm906, %v901, %v903
        %v909 = vsel %vm906, %v903, %v905
        %913 = vst [vmem:[#allocation2 + $0xd8] sm:$0xff] %v907
        %914 = vst [vmem:[#allocation2 + $0xe0] sm:$0xff] %v908
        %915 = vst.msk [vmem:[#allocation2 + $0xe8] sm:$0xff] %vm313, %v909
        %v916 = vld [vmem:[%s300] sm:$0xff]
        %v917 = vld [vmem:[%s300 + $0x8] sm:$0xff]
        %v918 = vld [vmem:[%s300 + $0x10] sm:$0xff]
        %v919 = vld [vmem:[%s300 + $0x18] sm:$0xff]
        %924 = vrot.lane.b32.xlu0 %v916, 40
        %v925 = vpop.permute.xlu0 %924
        %926 = vrot.lane.b32.xlu0 %v917, 40
        %v927 = vpop.permute.xlu0 %926
        %928 = vrot.lane.b32.xlu0 %v918, 40
        %v929 = vpop.permute.xlu0 %928
        %930 = vrot.lane.b32.xlu0 %v919, 40
        %v931 = vpop.permute.xlu0 %930
        %vm932 = vcmask 326656
        %v933 = vsel %vm932, %v925, %v927
        %v934 = vsel %vm932, %v927, %v929
        %v935 = vsel %vm932, %v929, %v931
        %939 = vst [vmem:[#allocation2 + $0xf0] sm:$0xff] %v933
        %940 = vst [vmem:[#allocation2 + $0xf8] sm:$0xff] %v934
        %941 = vst.msk [vmem:[#allocation2 + $0x100] sm:$0xff] %vm313, %v935
        %v942 = vld [vmem:[%s300] sm:$0xff]
        %v943 = vld [vmem:[%s300 + $0x8] sm:$0xff]
        %v944 = vld [vmem:[%s300 + $0x10] sm:$0xff]
        %v945 = vld [vmem:[%s300 + $0x18] sm:$0xff]
        %950 = vrot.lane.b32.xlu0 %v942, 38
        %v951 = vpop.permute.xlu0 %950
        %952 = vrot.lane.b32.xlu0 %v943, 38
        %v953 = vpop.permute.xlu0 %952
        %954 = vrot.lane.b32.xlu0 %v944, 38
        %v955 = vpop.permute.xlu0 %954
        %956 = vrot.lane.b32.xlu0 %v945, 38
        %v957 = vpop.permute.xlu0 %956
        %vm958 = vcmask 310272
        %v959 = vsel %vm958, %v951, %v953
        %v960 = vsel %vm958, %v953, %v955
        %v961 = vsel %vm958, %v955, %v957
        %965 = vst [vmem:[#allocation2 + $0x108] sm:$0xff] %v959
        %966 = vst [vmem:[#allocation2 + $0x110] sm:$0xff] %v960
        %967 = vst.msk [vmem:[#allocation2 + $0x118] sm:$0xff] %vm313, %v961
        %v968 = vld [vmem:[%s300] sm:$0xff]
        %v969 = vld [vmem:[%s300 + $0x8] sm:$0xff]
        %v970 = vld [vmem:[%s300 + $0x10] sm:$0xff]
        %v971 = vld [vmem:[%s300 + $0x18] sm:$0xff]
        %976 = vrot.lane.b32.xlu0 %v968, 2
        %v977 = vpop.permute.xlu0 %976
        %978 = vrot.lane.b32.xlu0 %v969, 2
        %v979 = vpop.permute.xlu0 %978
        %980 = vrot.lane.b32.xlu0 %v970, 2
        %v981 = vpop.permute.xlu0 %980
        %982 = vrot.lane.b32.xlu0 %v971, 2
        %v983 = vpop.permute.xlu0 %982
        %vm984 = vcmask 15360
        %v985 = vsel %vm984, %v977, %v979
        %v986 = vsel %vm984, %v979, %v981
        %v987 = vsel %vm984, %v981, %v983
        %991 = vst [vmem:[#allocation2 + $0x120] sm:$0xff] %v985
        %992 = vst [vmem:[#allocation2 + $0x128] sm:$0xff] %v986
        %993 = vst.msk [vmem:[#allocation2 + $0x130] sm:$0xff] %vm313, %v987
        %v994 = vld [vmem:[%s300 + $0x8] sm:$0xff]
        %v995 = vld [vmem:[%s300 + $0x10] sm:$0xff]
        %v996 = vld [vmem:[%s300 + $0x18] sm:$0xff]
        %997 = vst [vmem:[#allocation2 + $0x138] sm:$0xff] %v994
        %998 = vst [vmem:[#allocation2 + $0x140] sm:$0xff] %v995
        %999 = vst.msk [vmem:[#allocation2 + $0x148] sm:$0xff] %vm313, %v996
        %v1000 = vld [vmem:[%s300 + $0x8] sm:$0xff]
        %v1001 = vld [vmem:[%s300 + $0x10] sm:$0xff]
        %v1002 = vld [vmem:[%s300 + $0x18] sm:$0xff]
        %1006 = vrot.lane.b32.xlu0 %v1000, 126
        %v1007 = vpop.permute.xlu0 %1006
        %1008 = vrot.lane.b32.xlu0 %v1001, 126
        %v1009 = vpop.permute.xlu0 %1008
        %1010 = vrot.lane.b32.xlu0 %v1002, 126
        %v1011 = vpop.permute.xlu0 %1010
        %vm1012 = vcmask 1031168
        %v1013 = vsel %vm1012, %v1007, %v1009
        %v1014 = vsel %vm1012, %v1009, %v1011
        %1018 = vst [vmem:[#allocation2 + $0x150] sm:$0xff] %v1013
        %1019 = vst [vmem:[#allocation2 + $0x158] sm:$0xff] %v1014
        %1020 = vst.msk [vmem:[#allocation2 + $0x160] sm:$0xff] %vm313, %v1011
        %v1021 = vld [vmem:[%s300 + $0x8] sm:$0xff]
        %v1022 = vld [vmem:[%s300 + $0x10] sm:$0xff]
        %v1023 = vld [vmem:[%s300 + $0x18] sm:$0xff]
        %1027 = vrot.lane.b32.xlu0 %v1021, 90
        %v1028 = vpop.permute.xlu0 %1027
        %1029 = vrot.lane.b32.xlu0 %v1022, 90
        %v1030 = vpop.permute.xlu0 %1029
        %1031 = vrot.lane.b32.xlu0 %v1023, 90
        %v1032 = vpop.permute.xlu0 %1031
        %vm1033 = vcmask 736256
        %v1034 = vsel %vm1033, %v1028, %v1030
        %v1035 = vsel %vm1033, %v1030, %v1032
        %1039 = vst [vmem:[#allocation2 + $0x168] sm:$0xff] %v1034
        %1040 = vst [vmem:[#allocation2 + $0x170] sm:$0xff] %v1035
        %1041 = vst.msk [vmem:[#allocation2 + $0x178] sm:$0xff] %vm313, %v1032
        %v1042 = vld [vmem:[%s300 + $0x8] sm:$0xff]
        %v1043 = vld [vmem:[%s300 + $0x10] sm:$0xff]
        %v1044 = vld [vmem:[%s300 + $0x18] sm:$0xff]
        %1048 = vrot.lane.b32.xlu0 %v1042, 88
        %v1049 = vpop.permute.xlu0 %1048
        %1050 = vrot.lane.b32.xlu0 %v1043, 88
        %v1051 = vpop.permute.xlu0 %1050
        %1052 = vrot.lane.b32.xlu0 %v1044, 88
        %v1053 = vpop.permute.xlu0 %1052
        %vm1054 = vcmask 719872
        %v1055 = vsel %vm1054, %v1049, %v1051
        %v1056 = vsel %vm1054, %v1051, %v1053
        %1060 = vst [vmem:[#allocation2 + $0x180] sm:$0xff] %v1055
        %1061 = vst [vmem:[#allocation2 + $0x188] sm:$0xff] %v1056
        %1062 = vst.msk [vmem:[#allocation2 + $0x190] sm:$0xff] %vm313, %v1053
        %v1063 = vld [vmem:[%s300 + $0x8] sm:$0xff]
        %v1064 = vld [vmem:[%s300 + $0x10] sm:$0xff]
        %v1065 = vld [vmem:[%s300 + $0x18] sm:$0xff]
        %1069 = vrot.lane.b32.xlu0 %v1063, 86
        %v1070 = vpop.permute.xlu0 %1069
        %1071 = vrot.lane.b32.xlu0 %v1064, 86
        %v1072 = vpop.permute.xlu0 %1071
        %1073 = vrot.lane.b32.xlu0 %v1065, 86
        %v1074 = vpop.permute.xlu0 %1073
        %vm1075 = vcmask 703488
        %v1076 = vsel %vm1075, %v1070, %v1072
        %v1077 = vsel %vm1075, %v1072, %v1074
        %1081 = vst [vmem:[#allocation2 + $0x198] sm:$0xff] %v1076
        %1082 = vst [vmem:[#allocation2 + $0x1a0] sm:$0xff] %v1077
        %1083 = vst.msk [vmem:[#allocation2 + $0x1a8] sm:$0xff] %vm313, %v1074
        %v1084 = vld [vmem:[#allocation2] sm:$0xff]
        %v1085 = vld [vmem:[#allocation2 + $0x8] sm:$0xff]
        %v1086 = vld [vmem:[#allocation2 + $0x10] sm:$0xff]
        %v1087 = vld [vmem:[#allocation2 + $0x18] sm:$0xff]
        %v1088 = vld [vmem:[#allocation2 + $0x20] sm:$0xff]
        %v1089 = vld [vmem:[#allocation2 + $0x28] sm:$0xff]
        %v1090 = vld [vmem:[#allocation2 + $0x30] sm:$0xff]
        %v1091 = vld [vmem:[#allocation2 + $0x38] sm:$0xff]
        %v1092 = vld [vmem:[#allocation2 + $0x40] sm:$0xff]
        %v1093 = vld [vmem:[#allocation2 + $0x48] sm:$0xff]
        %v1094 = vld [vmem:[#allocation2 + $0x50] sm:$0xff]
        %v1095 = vld [vmem:[#allocation2 + $0x58] sm:$0xff]
        %v1096 = vld [vmem:[#allocation2 + $0x60] sm:$0xff]
        %v1097 = vld [vmem:[#allocation2 + $0x68] sm:$0xff]
        %v1098 = vld [vmem:[#allocation2 + $0x70] sm:$0xff]
        %v1099 = vld [vmem:[#allocation2 + $0x78] sm:$0xff]
        %v1100 = vld [vmem:[#allocation2 + $0x80] sm:$0xff]
        %v1101 = vld [vmem:[#allocation2 + $0x88] sm:$0xff]
        %v1102 = vld [vmem:[#allocation2 + $0x90] sm:$0xff]
        %v1103 = vld [vmem:[#allocation2 + $0x98] sm:$0xff]
        %v1104 = vld [vmem:[#allocation2 + $0xa0] sm:$0xff]
        %v1105 = vld [vmem:[#allocation2 + $0xa8] sm:$0xff]
        %v1106 = vld [vmem:[#allocation2 + $0xb0] sm:$0xff]
        %v1107 = vld [vmem:[#allocation2 + $0xb8] sm:$0xff]
        %v1108 = vld [vmem:[#allocation2 + $0xc0] sm:$0xff]
        %v1109 = vld [vmem:[#allocation2 + $0xc8] sm:$0xff]
        %v1110 = vld [vmem:[#allocation2 + $0xd0] sm:$0xff]
        %v1111 = vld [vmem:[#allocation2 + $0xd8] sm:$0xff]
        %v1112 = vld [vmem:[#allocation2 + $0xe0] sm:$0xff]
        %v1113 = vld [vmem:[#allocation2 + $0xe8] sm:$0xff]
        %v1114 = vld [vmem:[#allocation2 + $0xf0] sm:$0xff]
        %v1115 = vld [vmem:[#allocation2 + $0xf8] sm:$0xff]
        %v1116 = vld [vmem:[#allocation2 + $0x100] sm:$0xff]
        %v1117 = vld [vmem:[#allocation2 + $0x108] sm:$0xff]
        %v1118 = vld [vmem:[#allocation2 + $0x110] sm:$0xff]
        %v1119 = vld [vmem:[#allocation2 + $0x118] sm:$0xff]
        %v1120 = vld [vmem:[#allocation2 + $0x120] sm:$0xff]
        %v1121 = vld [vmem:[#allocation2 + $0x128] sm:$0xff]
        %v1122 = vld [vmem:[#allocation2 + $0x130] sm:$0xff]
        %v1123 = vld [vmem:[#allocation2 + $0x138] sm:$0xff]
        %v1124 = vld [vmem:[#allocation2 + $0x140] sm:$0xff]
        %v1125 = vld [vmem:[#allocation2 + $0x148] sm:$0xff]
        %v1126 = vld [vmem:[#allocation2 + $0x150] sm:$0xff]
        %v1127 = vld [vmem:[#allocation2 + $0x158] sm:$0xff]
        %v1128 = vld [vmem:[#allocation2 + $0x160] sm:$0xff]
        %v1129 = vld [vmem:[#allocation2 + $0x168] sm:$0xff]
        %v1130 = vld [vmem:[#allocation2 + $0x170] sm:$0xff]
        %v1131 = vld [vmem:[#allocation2 + $0x178] sm:$0xff]
        %v1132 = vld [vmem:[#allocation2 + $0x180] sm:$0xff]
        %v1133 = vld [vmem:[#allocation2 + $0x188] sm:$0xff]
        %v1134 = vld [vmem:[#allocation2 + $0x190] sm:$0xff]
        %v1135 = vld [vmem:[#allocation2 + $0x198] sm:$0xff]
        %v1136 = vld [vmem:[#allocation2 + $0x1a0] sm:$0xff]
        %v1137 = vld [vmem:[#allocation2 + $0x1a8] sm:$0xff]
        %1139 = vset.pattern.permute.xlu0 0
        %1140 = vperm.xlu0 %1139, %v703
        %v1141 = vpop.permute.xlu0 %1140
        %1144 = vst [vmem:[#allocation1] ss:$2 sm:$0xff] %v702
        %v1145 = vld.sshfl [vmem:[#allocation1] sm:$0xff pattern:$0x75316420]
        %v1146 = vld.sshfl [vmem:[#allocation1 + $0x8] sm:$0xff pattern:$0x75316420]
        %vm1148 = vcmask 130048
        %v1149 = vsel %vm1148, %v1146, 0
        %1151 = vmatpush.msra.mxu0 %v1129
        %1152 = vmatpush.msra.mxu0 %v1126
        %1153 = vmatpush.msra.mxu0 %v1123
        %1154 = vmatpush.msra.mxu0 %v1120
        %1155 = vmatpush.msra.mxu0 %v1117
        %1156 = vmatpush.msra.mxu0 %v1114
        %1157 = vmatpush.msra.mxu0 %v1111
        %1158 = vmatpush.msra.mxu0 %v1108
        %1159 = vmatpush.msra.mxu0 %v1105
        %1160 = vmatpush.msra.mxu0 %v1102
        %1161 = vmatpush.msra.mxu0 %v1099
        %1162 = vmatpush.msra.mxu0 %v1096
        %1163 = vmatpush.msra.mxu0 %v1093
        %1164 = vmatpush.msra.mxu0 %v1090
        %1165 = vmatpush.msra.mxu0 %v1087
        %1166 = vmatpush.msra.mxu0 %v1084
        %1167 = vmatmul.f32.gmra.mxu0 %v1145
        %v1168 = vpop.f32.mrf.mxu0
        %v1169 = vadd.f32 %v1141, %v1168
        %1170 = vdwg.mxu0
        %1171 = vmatpush.msra.mxu0 0.0
        %1172 = vmatpush.msra.mxu0 0.0
        %1173 = vmatpush.msra.mxu0 0.0
        %1174 = vmatpush.msra.mxu0 0.0
        %1175 = vmatpush.msra.mxu0 0.0
        %1176 = vmatpush.msra.mxu0 0.0
        %1177 = vmatpush.msra.mxu0 0.0
        %1178 = vmatpush.msra.mxu0 0.0
        %1179 = vmatpush.msra.mxu0 0.0
        %1180 = vmatpush.msra.mxu0 0.0
        %1181 = vmatpush.msra.mxu0 0.0
        %1182 = vmatpush.msra.mxu0 0.0
        %1183 = vmatpush.msra.mxu0 0.0
        %1184 = vmatpush.msra.mxu0 0.0
        %1185 = vmatpush.msra.mxu0 %v1135
        %1186 = vmatpush.msra.mxu0 %v1132
        %1187 = vmatmul.f32.gmra.mxu0 %v1149
        %v1188 = vpop.f32.mrf.mxu0
        %v1189 = vadd.f32 %v1169, %v1188
        %1190 = vdwg.mxu0
        %1191 = vmatpush.msra.mxu0 %v1130
        %1192 = vmatpush.msra.mxu0 %v1127
        %1193 = vmatpush.msra.mxu0 %v1124
        %1194 = vmatpush.msra.mxu0 %v1121
        %1195 = vmatpush.msra.mxu0 %v1118
        %1196 = vmatpush.msra.mxu0 %v1115
        %1197 = vmatpush.msra.mxu0 %v1112
        %1198 = vmatpush.msra.mxu0 %v1109
        %1199 = vmatpush.msra.mxu0 %v1106
        %1200 = vmatpush.msra.mxu0 %v1103
        %1201 = vmatpush.msra.mxu0 %v1100
        %1202 = vmatpush.msra.mxu0 %v1097
        %1203 = vmatpush.msra.mxu0 %v1094
        %1204 = vmatpush.msra.mxu0 %v1091
        %1205 = vmatpush.msra.mxu0 %v1088
        %1206 = vmatpush.msra.mxu0 %v1085
        %1207 = vmatmul.f32.gmra.mxu0 %v1145
        %v1208 = vpop.f32.mrf.mxu0
        %v1209 = vadd.f32 %v1141, %v1208
        %1210 = vdwg.mxu0
        %1211 = vmatpush.msra.mxu0 0.0
        %1212 = vmatpush.msra.mxu0 0.0
        %1213 = vmatpush.msra.mxu0 0.0
        %1214 = vmatpush.msra.mxu0 0.0
        %1215 = vmatpush.msra.mxu0 0.0
        %1216 = vmatpush.msra.mxu0 0.0
        %1217 = vmatpush.msra.mxu0 0.0
        %1218 = vmatpush.msra.mxu0 0.0
        %1219 = vmatpush.msra.mxu0 0.0
        %1220 = vmatpush.msra.mxu0 0.0
        %1221 = vmatpush.msra.mxu0 0.0
        %1222 = vmatpush.msra.mxu0 0.0
        %1223 = vmatpush.msra.mxu0 0.0
        %1224 = vmatpush.msra.mxu0 0.0
        %1225 = vmatpush.msra.mxu0 %v1136
        %1226 = vmatpush.msra.mxu0 %v1133
        %1227 = vmatmul.f32.gmra.mxu0 %v1149
        %v1228 = vpop.f32.mrf.mxu0
        %v1229 = vadd.f32 %v1209, %v1228
        %1230 = vdwg.mxu0
        %1231 = vmatpush.msra.mxu0 %v1131
        %1232 = vmatpush.msra.mxu0 %v1128
        %1233 = vmatpush.msra.mxu0 %v1125
        %1234 = vmatpush.msra.mxu0 %v1122
        %1235 = vmatpush.msra.mxu0 %v1119
        %1236 = vmatpush.msra.mxu0 %v1116
        %1237 = vmatpush.msra.mxu0 %v1113
        %1238 = vmatpush.msra.mxu0 %v1110
        %1239 = vmatpush.msra.mxu0 %v1107
        %1240 = vmatpush.msra.mxu0 %v1104
        %1241 = vmatpush.msra.mxu0 %v1101
        %1242 = vmatpush.msra.mxu0 %v1098
        %1243 = vmatpush.msra.mxu0 %v1095
        %1244 = vmatpush.msra.mxu0 %v1092
        %1245 = vmatpush.msra.mxu0 %v1089
        %1246 = vmatpush.msra.mxu0 %v1086
        %1247 = vmatmul.f32.gmra.mxu0 %v1145
        %v1248 = vpop.f32.mrf.mxu0
        %v1249 = vadd.f32 %v1141, %v1248
        %1250 = vdwg.mxu0
        %1251 = vmatpush.msra.mxu0 0.0
        %1252 = vmatpush.msra.mxu0 0.0
        %1253 = vmatpush.msra.mxu0 0.0
        %1254 = vmatpush.msra.mxu0 0.0
        %1255 = vmatpush.msra.mxu0 0.0
        %1256 = vmatpush.msra.mxu0 0.0
        %1257 = vmatpush.msra.mxu0 0.0
        %1258 = vmatpush.msra.mxu0 0.0
        %1259 = vmatpush.msra.mxu0 0.0
        %1260 = vmatpush.msra.mxu0 0.0
        %1261 = vmatpush.msra.mxu0 0.0
        %1262 = vmatpush.msra.mxu0 0.0
        %1263 = vmatpush.msra.mxu0 0.0
        %1264 = vmatpush.msra.mxu0 0.0
        %1265 = vmatpush.msra.mxu0 %v1137
        %1266 = vmatpush.msra.mxu0 %v1134
        %1267 = vmatmul.f32.gmra.mxu0 %v1149
        %v1268 = vpop.f32.mrf.mxu0
        %v1269 = vadd.f32 %v1249, %v1268
        %1270 = vdwg.mxu0
        %v1271 = vmul.f32 %v1189, %v680
        %v1272 = vmul.f32 %v1229, %v681
        %v1273 = vmul.f32 %v1269, %v682
        %1274 = vst [vmem:[%s300 + $0x28] sm:$0xf] %v1271
        %1275 = vst [vmem:[%s300 + $0x30] sm:$0xf] %v1272
        %1276 = vst.msk [vmem:[%s300 + $0x38] sm:$0xf] %vm413, %v1273
        %p1277 = scmp.lt.s32.totalorder %s21, 1
        %s1278 = scalar_select %p1277, %s21, 1
        %s1279 = smul.addr %s1278, 8
        %s1280 = smul.addr %s1279, 8
        %s1281 = scalar_lea.vmem %s6, %s1280
        // Predicated region
        $region57: #{tpu_custom_call.1} parent=43 // pred_check
          %p1282 = pneg %p170
        $region58: #{tpu_custom_call.1} parent=43 // pred_check_branch
          %1284 = sbr.rel (%p1282) target = $region60
        $region59: #{tpu_custom_call.1} parent=43 // pred_region
          _
        $region60: #{tpu_custom_call.1} parent=43 // pred_fallthru
          _
      $region44: #{tpu_custom_call.1} parent=5 // pred_fallthru
        _
      %p1285 = scmp.le.s32.totalorder 2, %s16
      // Predicated region
      $region61: #{tpu_custom_call.1} parent=5 // pred_check
        %p1286 = pneg %p1285
      $region62: #{tpu_custom_call.1} parent=5 // pred_check_branch
        %1288 = sbr.rel (%p1286) target = $region64
      $region63: #{tpu_custom_call.1} parent=5 // pred_region
        %s1289 = ssub.s32 %s16, 2
        // Predicated region
        $region65: #{tpu_custom_call.1} parent=63 // pred_check
          %p1290 = pneg %p176
        $region66: #{tpu_custom_call.1} parent=63 // pred_check_branch
          %1292 = sbr.rel (%p1290) target = $region68
        $region67: #{tpu_custom_call.1} parent=63 // pred_region
          %p1293 = scmp.lt.s32.totalorder %s22, 1
          %s1294 = scalar_select %p1293, %s22, 1
          %s1295 = smul.addr %s1294, 8
          %s1296 = smul.addr %s1295, 8
          %s1297 = scalar_lea.vmem %s6, %s1296
        $region68: #{tpu_custom_call.1} parent=63 // pred_fallthru
          _
      $region64: #{tpu_custom_call.1} parent=5 // pred_fallthru
        _
    $region6: #{tpu_custom_call.1} parent=1 // loop_footer
      %s20 = sadd.s32 1, %s16
    $region7: #{tpu_custom_call.1} parent=1 // loop_footer_branch
      %15 = sbr.rel target = $region3
    $region8: #{tpu_custom_call.1} parent=1 // loop_exit
      _
    %1298 = vsyncpa [#allocation4], 1
    %s1299 = scalar_lea.sflag [#allocation4], 1
    %1300 = vsyncpa %s1299, 1
    %1301 = vsyncpa [#allocation6], 1

</llo_original>
